<compile_context>
chip_gen: v7x
topology: tpu7x:2x2x1
jax: 0.10.0
libtpu: 0.0.40
codegen_flags: <defaults>
</compile_context>

<pallas_src>
import functools
import math

import jax
import jax.numpy as jnp
from jax.experimental import pallas as pl
from jax.experimental.pallas import tpu as pltpu


def _round_up(x, m):
    return ((x + m - 1) // m) * m


# ---------------------------------------------------------------------------
# Kernel A: aggregate-then-project (used when F_out_p >= F_in_p).
# grid = (dst-tile i [parallel], relation r [arbitrary], src-tile s [arbitrary])
# ---------------------------------------------------------------------------
def _relgcn_agg_kernel(adj_ref, feat_src_ref, w_ref, feat_dst_ref, loop_w_ref,
                       bias_ref, out_ref, agg_ref, *, sqrt_a, sqrt_1ma,
                       use_bias, self_loop):
    """adj_ref      : (1, TM, TS)      int8   A_r[dst_tile, src_tile]
       feat_src_ref : (TS, F_in)       bf16
       w_ref        : (1, F_in, F_out) bf16   relation weight W_r
       feat_dst_ref : (TM, F_in)       bf16   (self-loop)
       loop_w_ref   : (F_in, F_out)    bf16
       bias_ref     : (1, F_out)       f32
       out_ref      : (TM, F_out)      f32    resident accumulator (block (i,0))
       agg_ref      : (TM, F_in)       f32    per-relation neighbour sum scratch
    """
    r = pl.program_id(1)
    s = pl.program_id(2)

    # Init: self-loop matmul + bias folded into the very first step per dst
    # tile (hides under the prefetch of the next adjacency tile).
    @pl.when(jnp.logical_and(r == 0, s == 0))
    def _init():
        if self_loop:
            init = jnp.dot(feat_dst_ref[...], loop_w_ref[...],
                           preferred_element_type=jnp.float32) * sqrt_1ma
        else:
            init = jnp.zeros_like(out_ref)
        if use_bias:
            init = init + bias_ref[...]
        out_ref[...] = init

    # Per-relation neighbour aggregation in f32 scratch.
    @pl.when(s == 0)
    def _zero_agg():
        agg_ref[...] = jnp.zeros_like(agg_ref)

    agg_ref[...] += jnp.dot(adj_ref[0].astype(jnp.bfloat16), feat_src_ref[...],
                            preferred_element_type=jnp.float32)

    # Project once per relation (last src tile), scaled by sqrt(alpha).
    @pl.when(s == pl.num_programs(2) - 1)
    def _project():
        out_ref[...] += jnp.dot(agg_ref[...].astype(jnp.bfloat16), w_ref[0],
                                preferred_element_type=jnp.float32) * sqrt_a


# ---------------------------------------------------------------------------
# Kernel B: pre-projected messages Y_r = (feat @ W_r) * sqrt(alpha) hoisted to
# the host (used when F_out_p < F_in_p).
# ---------------------------------------------------------------------------
def _relgcn_pre_kernel(adj_ref, y_ref, feat_dst_ref, loop_w_ref, bias_ref,
                       out_ref, *, sqrt_1ma, use_bias, self_loop):
    """adj_ref      : (1, TM, TS)      int8
       y_ref        : (1, TS, F_out)   bf16   pre-projected (and pre-scaled)
       feat_dst_ref : (TM, F_in)       bf16
       loop_w_ref   : (F_in, F_out)    bf16
       bias_ref     : (1, F_out)       f32
       out_ref      : (TM, F_out)      f32    resident accumulator (block (i,0))
    """
    r = pl.program_id(1)
    s = pl.program_id(2)

    @pl.when(jnp.logical_and(r == 0, s == 0))
    def _init():
        if self_loop:
            init = jnp.dot(feat_dst_ref[...], loop_w_ref[...],
                           preferred_element_type=jnp.float32) * sqrt_1ma
        else:
            init = jnp.zeros_like(out_ref)
        if use_bias:
            init = init + bias_ref[...]
        out_ref[...] = init

    out_ref[...] += jnp.dot(adj_ref[0].astype(jnp.bfloat16), y_ref[0],
                            preferred_element_type=jnp.float32)


def _vmem_estimate(tm, ts, f_in_p, f_out_p, reorder):
    est = 2 * tm * ts * 1            # adj int8, double-buffered
    est += 2 * tm * f_out_p * 4      # resident/double-buffered output block
    est += 2 * tm * f_in_p * 2       # feat_dst bf16
    est += 2 * f_in_p * f_out_p * 2  # loop weight bf16
    est += 2 * 8 * f_out_p * 4       # bias (sublane padded)
    if reorder:
        est += 2 * ts * f_out_p * 2      # Y tile bf16
    else:
        est += 2 * ts * f_in_p * 2       # feat_src bf16
        est += 2 * f_in_p * f_out_p * 2  # W_r bf16
        est += tm * f_in_p * 4           # agg scratch f32
    return est


def relgcn_forward(adj, feat, weight, loop_weight, h_bias, *, alpha=0.5,
                   use_bias=True, self_loop=True, tm=256, ts=512):
    """adj: [R, N_dst, N_src] edge multiplicities (must fit int8, i.e. <=127);
    feat: [N_src, F_in]; weight: [R, F_in, F_out]; loop_weight: [F_in, F_out];
    h_bias: [F_out]. Dst nodes are the first N_dst rows of feat (DGL semantics)."""
    assert 0.0 < alpha <= 1.0
    R, Nd, Ns = adj.shape
    N_feat, F_in = feat.shape
    F_out = weight.shape[2]
    assert N_feat == Ns and Nd <= N_feat

    # Lane-dense feature dims.
    F_in_p = _round_up(F_in, 128)
    F_out_p = _round_up(F_out, 128)
    reorder = F_out_p < F_in_p          # project-then-aggregate (hoisted Y)

    sqrt_a = math.sqrt(alpha)
    sqrt_1ma = math.sqrt(1.0 - alpha)

    # Tile sizes: dst tile multiple of 32 (int8 sublane packing), src tile
    # multiple of 128 (lanes).
    tm = _round_up(min(tm, Nd), 32)
    ts = _round_up(min(ts, Ns), 128)

    # Multi-TensorCore chips (v4/v7x): make sure the only 'parallel' axis has
    # at least 2 blocks so both cores get work.
    try:
        kind = jax.devices()[0].device_kind.lower()
        multi_tc = ("v7" in kind) or ("7x" in kind) or ("v4" in kind)
    except Exception:  # pragma: no cover
        multi_tc = False
    if multi_tc and _round_up(Nd, tm) // tm < 2 and Nd >= 64:
        tm = _round_up((Nd + 1) // 2, 32)

    # VMEM budget from the actual chip (v7x: 64 MiB -> ~51 MiB limit;
    # v5e/v6e: 128 MiB -> ~102 MiB limit), with a tile shrink loop.
    try:
        vmem_cap = int(pltpu.get_tpu_info().vmem_capacity_bytes)
    except Exception:  # pragma: no cover
        vmem_cap = 128 * 2 ** 20
    vmem_limit = int(0.8 * vmem_cap)
    shrink_target = int(0.7 * vmem_limit)
    while (_vmem_estimate(tm, ts, F_in_p, F_out_p, reorder) > shrink_target
           and (ts > 128 or tm > 32)):
        if ts > 128:
            ts = max(128, _round_up(ts // 2, 128))
        else:
            tm = max(32, _round_up(tm // 2, 32))

    Nd_p = _round_up(Nd, tm)
    Ns_p = _round_up(Ns, ts)
    grid_i, grid_s = Nd_p // tm, Ns_p // ts

    # Host-side padding / casts (padded rows/cols are zero -> contribute 0).
    adj_p = jnp.pad(adj.astype(jnp.int8),
                    ((0, 0), (0, Nd_p - Nd), (0, Ns_p - Ns)))
    feat_dst = jnp.pad(feat[:Nd].astype(jnp.bfloat16),
                       ((0, Nd_p - Nd), (0, F_in_p - F_in)))
    loop_w_p = jnp.pad(loop_weight.astype(jnp.bfloat16),
                       ((0, F_in_p - F_in), (0, F_out_p - F_out)))
    bias_p = jnp.pad(h_bias.astype(jnp.float32),
                     (0, F_out_p - F_out)).reshape(1, F_out_p)

    if reorder:
        # Hoist Y_r = (feat @ W_r) * sqrt(alpha) to one XLA einsum (f32 math,
        # bf16 storage); kernel body is a single adj @ Y matmul per step.
        y = jnp.einsum("sf,rfo->rso", feat.astype(jnp.float32),
                       weight.astype(jnp.float32)) * sqrt_a
        y_p = jnp.pad(y.astype(jnp.bfloat16),
                      ((0, 0), (0, Ns_p - Ns), (0, F_out_p - F_out)))
        kernel = functools.partial(_relgcn_pre_kernel, sqrt_1ma=sqrt_1ma,
                                   use_bias=use_bias, self_loop=self_loop)
        in_specs = [
            pl.BlockSpec((1, tm, ts), lambda i, r, s: (r, i, s)),           # adj
            pl.BlockSpec((1, ts, F_out_p), lambda i, r, s: (r, s, 0)),      # Y_r
            pl.BlockSpec((tm, F_in_p), lambda i, r, s: (i, 0)),             # feat_dst
            pl.BlockSpec((F_in_p, F_out_p), lambda i, r, s: (0, 0)),        # loop_w
            pl.BlockSpec((1, F_out_p), lambda i, r, s: (0, 0)),             # bias
        ]
        operands = (adj_p, y_p, feat_dst, loop_w_p, bias_p)
        scratch_shapes = []
        flops = 2 * R * Nd_p * Ns_p * F_out_p + 2 * Nd_p * F_in_p * F_out_p
        bytes_accessed = (R * Nd_p * Ns_p                       # adj (int8)
                          + grid_i * R * Ns_p * F_out_p * 2     # Y re-reads
                          + Nd_p * F_in_p * 2                   # feat_dst
                          + F_in_p * F_out_p * 2                # loop weight
                          + F_out_p * 4
                          + Nd_p * F_out_p * 4)                 # output
    else:
        feat_src = jnp.pad(feat.astype(jnp.bfloat16),
                           ((0, Ns_p - N_feat), (0, F_in_p - F_in)))
        weight_p = jnp.pad(weight.astype(jnp.bfloat16),
                           ((0, 0), (0, F_in_p - F_in), (0, F_out_p - F_out)))
        kernel = functools.partial(_relgcn_agg_kernel, sqrt_a=sqrt_a,
                                   sqrt_1ma=sqrt_1ma, use_bias=use_bias,
                                   self_loop=self_loop)
        in_specs = [
            pl.BlockSpec((1, tm, ts), lambda i, r, s: (r, i, s)),            # adj
            pl.BlockSpec((ts, F_in_p), lambda i, r, s: (s, 0)),              # feat src
            pl.BlockSpec((1, F_in_p, F_out_p), lambda i, r, s: (r, 0, 0)),   # W_r
            pl.BlockSpec((tm, F_in_p), lambda i, r, s: (i, 0)),              # feat_dst
            pl.BlockSpec((F_in_p, F_out_p), lambda i, r, s: (0, 0)),         # loop_w
            pl.BlockSpec((1, F_out_p), lambda i, r, s: (0, 0)),              # bias
        ]
        operands = (adj_p, feat_src, weight_p, feat_dst, loop_w_p, bias_p)
        scratch_shapes = [pltpu.VMEM((tm, F_in_p), jnp.float32)]             # agg
        flops = (2 * R * Nd_p * Ns_p * F_in_p            # A_r @ feat
                 + 2 * R * Nd_p * F_in_p * F_out_p       # per-relation projection
                 + 2 * Nd_p * F_in_p * F_out_p)          # self-loop
        bytes_accessed = (R * Nd_p * Ns_p                       # adj (int8)
                          + grid_i * R * Ns_p * F_in_p * 2      # feat re-reads
                          + grid_i * R * F_in_p * F_out_p * 2   # weights
                          + Nd_p * F_in_p * 2                   # feat_dst
                          + F_in_p * F_out_p * 2                # loop weight
                          + F_out_p * 4
                          + Nd_p * F_out_p * 4)                 # output

    cost = pl.CostEstimate(flops=int(flops), transcendentals=0,
                           bytes_accessed=int(bytes_accessed))

    out = pl.pallas_call(
        kernel,
        out_shape=jax.ShapeDtypeStruct((Nd_p, F_out_p), jnp.float32),
        grid_spec=pltpu.PrefetchScalarGridSpec(
            num_scalar_prefetch=0,
            grid=(grid_i, R, grid_s),
            in_specs=in_specs,
            out_specs=pl.BlockSpec((tm, F_out_p), lambda i, r, s: (i, 0)),
            scratch_shapes=scratch_shapes,
        ),
        compiler_params=pltpu.CompilerParams(
            dimension_semantics=("parallel", "arbitrary", "arbitrary"),
            vmem_limit_bytes=vmem_limit),
        cost_estimate=cost,
    )(*operands)

    return out[:Nd, :F_out]


def _xavier_uniform(key, shape, fan_in, fan_out, gain):
    bound = gain * math.sqrt(6.0 / (fan_in + fan_out))
    return jax.random.uniform(key, shape, jnp.float32, -bound, bound)


def _bf(x):
    return x.astype(jnp.bfloat16).astype(jnp.float32)


if __name__ == "__main__":
    alpha = 0.5
    key = jax.random.PRNGKey(0)

    def make_problem(key, N, F_in, F_out, R, E):
        k_feat, k_src, k_dst, k_et, k_w, k_lw, k_b = jax.random.split(key, 7)
        feat = jax.random.normal(k_feat, (N, F_in), jnp.float32)
        src = jax.random.randint(k_src, (E,), 0, N)
        dst = jax.random.randint(k_dst, (E,), 0, N)
        etypes = jax.random.randint(k_et, (E,), 0, R)
        gain = math.sqrt(2.0)  # nn.init.calculate_gain('relu')
        weight = _xavier_uniform(k_w, (R, F_in, F_out), F_in, F_out, gain)
        loop_weight = _xavier_uniform(k_lw, (F_in, F_out), F_in, F_out, gain)
        h_bias = 0.1 * jax.random.normal(k_b, (F_out,), jnp.float32)
        adj = jnp.zeros((R, N, N), jnp.float32).at[etypes, dst, src].add(1.0)
        return adj, feat, weight, loop_weight, h_bias

    # --- Test 1: F_in == F_out -> aggregate-then-project path ---------------
    N, F_in, F_out, R, E = 256, 32, 32, 2, 2048
    k1, k2 = jax.random.split(key)
    adj, feat, weight, loop_w, h_bias = make_problem(k1, N, F_in, F_out, R, E)
    out1 = jax.block_until_ready(
        relgcn_forward(adj, feat, weight, loop_w, h_bias, alpha=alpha))

    # Reference mirroring the kernel's bf16 boundary casts (f32 accumulation).
    agg = jnp.einsum("rds,sf->rdf", adj, _bf(feat))
    msg = jnp.einsum("rdf,rfo->do", _bf(agg), _bf(weight)) * math.sqrt(alpha)
    loop_msg = _bf(feat[:N]) @ _bf(loop_w) * math.sqrt(1.0 - alpha)
    ref1 = msg + h_bias + loop_msg
    assert jnp.allclose(out1, ref1, atol=5e-2, rtol=2e-2), "mismatch (agg path)"

    # --- Test 2: F_out < F_in -> hoisted pre-projection (Y) path ------------
    N, F_in, F_out, R, E = 256, 160, 32, 2, 2048
    adj, feat, weight, loop_w, h_bias = make_problem(k2, N, F_in, F_out, R, E)
    out2 = jax.block_until_ready(
        relgcn_forward(adj, feat, weight, loop_w, h_bias, alpha=alpha))

    y = _bf(jnp.einsum("sf,rfo->rso", feat, weight) * math.sqrt(alpha))
    msg = jnp.einsum("rds,rso->do", adj, y)
    loop_msg = _bf(feat[:N]) @ _bf(loop_w) * math.sqrt(1.0 - alpha)
    ref2 = msg + h_bias + loop_msg
    assert jnp.allclose(out2, ref2, atol=5e-2, rtol=2e-2), "mismatch (Y path)"

    print("KERNEL_OK")
</pallas_src>

<mosaic_0001>
module attributes {stable_mosaic.version = 11 : i64} {
  func.func @_relgcn_agg_kernel(%arg0: i32, %arg1: i32, %arg2: i32, %arg3: memref<1x256x256xi8, #tpu.memory_space<vmem>>, %arg4: memref<256x128xbf16, #tpu.memory_space<vmem>>, %arg5: memref<1x128x128xbf16, #tpu.memory_space<vmem>>, %arg6: memref<256x128xbf16, #tpu.memory_space<vmem>>, %arg7: memref<128x128xbf16, #tpu.memory_space<vmem>>, %arg8: memref<1x128xf32, #tpu.memory_space<vmem>>, %arg9: memref<256x128xf32, #tpu.memory_space<vmem>>, %arg10: memref<256x128xf32, #tpu.memory_space<vmem>>) attributes {dimension_semantics = [#tpu.dimension_semantics<parallel>, #tpu.dimension_semantics<arbitrary>, #tpu.dimension_semantics<arbitrary>], iteration_bounds = array<i64: 1, 2, 1>, scalar_prefetch = 0 : i64, scratch_operands = 1 : i64, tpu.core_type = #tpu.core_type<tc>, window_params = [{transform_indices = @transform_0, window_bounds = array<i64: 1, 256, 256>}, {transform_indices = @transform_1, window_bounds = array<i64: 256, 128>}, {transform_indices = @transform_2, window_bounds = array<i64: 1, 128, 128>}, {transform_indices = @transform_3, window_bounds = array<i64: 256, 128>}, {pipeline_mode = #tpu.pipeline_mode<synchronous>, transform_indices = @transform_4, window_bounds = array<i64: 128, 128>}, {pipeline_mode = #tpu.pipeline_mode<synchronous>, transform_indices = @transform_5, window_bounds = array<i64: 1, 128>}, {transform_indices = @transform_6, window_bounds = array<i64: 256, 128>}]} {
    %c0_i32 = arith.constant 0 : i32
    %0 = arith.cmpi eq, %arg1, %c0_i32 : i32
    %c0_i32_0 = arith.constant 0 : i32
    %1 = arith.cmpi eq, %arg2, %c0_i32_0 : i32
    %2 = arith.andi %0, %1 : i1
    %3 = arith.extui %2 : i1 to i32
    %c0_i32_1 = arith.constant 0 : i32
    %4 = arith.cmpi ne, %3, %c0_i32_1 : i32
    scf.if %4 {
      %c0_14 = arith.constant 0 : index
      %c0_15 = arith.constant 0 : index
      %19 = vector.load %arg6[%c0_14, %c0_15] : memref<256x128xbf16, #tpu.memory_space<vmem>>, vector<256x128xbf16>
      %c0_16 = arith.constant 0 : index
      %c0_17 = arith.constant 0 : index
      %20 = vector.load %arg7[%c0_16, %c0_17] : memref<128x128xbf16, #tpu.memory_space<vmem>>, vector<128x128xbf16>
      %cst_18 = arith.constant dense<0.000000e+00> : vector<256x128xf32>
      %21 = tpu.matmul %19, %20, %cst_18 {dimension_numbers = #tpu.dot_dimension_numbers<[1], [0], [0], [1], [0, 0, 1, 1], [], []>} : vector<256x128xbf16>, vector<128x128xbf16>, vector<256x128xf32> -> vector<256x128xf32>
      %cst_19 = arith.constant 0.707106769 : f32
      %22 = vector.broadcast %cst_19 : f32 to vector<256x128xf32>
      %23 = arith.mulf %21, %22 : vector<256x128xf32>
      %c0_20 = arith.constant 0 : index
      %c0_21 = arith.constant 0 : index
      %24 = vector.load %arg8[%c0_20, %c0_21] : memref<1x128xf32, #tpu.memory_space<vmem>>, vector<1x128xf32>
      %25 = vector.broadcast %24 : vector<1x128xf32> to vector<256x128xf32>
      %26 = arith.addf %23, %25 : vector<256x128xf32>
      %c0_22 = arith.constant 0 : index
      %c0_23 = arith.constant 0 : index
      %27 = vector.load %arg9[%c0_22, %c0_23] : memref<256x128xf32, #tpu.memory_space<vmem>>, vector<256x128xf32>
      tpu.vector_store %arg9[%c0_22, %c0_23], %26 {strides = array<i32>} : memref<256x128xf32, #tpu.memory_space<vmem>>, vector<256x128xf32>,
    } else {
    }
    %c0_i32_2 = arith.constant 0 : i32
    %5 = arith.cmpi eq, %arg2, %c0_i32_2 : i32
    %6 = arith.extui %5 : i1 to i32
    %c0_i32_3 = arith.constant 0 : i32
    %7 = arith.cmpi ne, %6, %c0_i32_3 : i32
    scf.if %7 {
      %cst_14 = arith.constant 0.000000e+00 : f32
      %19 = vector.broadcast %cst_14 : f32 to vector<256x128xf32>
      %c0_15 = arith.constant 0 : index
      %c0_16 = arith.constant 0 : index
      %20 = vector.load %arg10[%c0_15, %c0_16] : memref<256x128xf32, #tpu.memory_space<vmem>>, vector<256x128xf32>
      tpu.vector_store %arg10[%c0_15, %c0_16], %19 {strides = array<i32>} : memref<256x128xf32, #tpu.memory_space<vmem>>, vector<256x128xf32>,
    } else {
    }
    %c0 = arith.constant 0 : index
    %c0_4 = arith.constant 0 : index
    %8 = vector.load %arg10[%c0, %c0_4] : memref<256x128xf32, #tpu.memory_space<vmem>>, vector<256x128xf32>
    %c0_5 = arith.constant 0 : index
    %c0_6 = arith.constant 0 : index
    %c0_7 = arith.constant 0 : index
    %9 = vector.load %arg3[%c0_5, %c0_6, %c0_7] : memref<1x256x256xi8, #tpu.memory_space<vmem>>, vector<1x256x256xi8>
    %10 = vector.shape_cast %9 : vector<1x256x256xi8> to vector<256x256xi8>
    %11 = arith.sitofp %10 : vector<256x256xi8> to vector<256x256xbf16>
    %c0_8 = arith.constant 0 : index
    %c0_9 = arith.constant 0 : index
    %12 = vector.load %arg4[%c0_8, %c0_9] : memref<256x128xbf16, #tpu.memory_space<vmem>>, vector<256x128xbf16>
    %cst = arith.constant dense<0.000000e+00> : vector<256x128xf32>
    %13 = tpu.matmul %11, %12, %cst {dimension_numbers = #tpu.dot_dimension_numbers<[1], [0], [0], [1], [0, 0, 1, 1], [], []>} : vector<256x256xbf16>, vector<256x128xbf16>, vector<256x128xf32> -> vector<256x128xf32>
    %14 = arith.addf %8, %13 : vector<256x128xf32>
    %c0_10 = arith.constant 0 : index
    %c0_11 = arith.constant 0 : index
    %15 = vector.load %arg10[%c0_10, %c0_11] : memref<256x128xf32, #tpu.memory_space<vmem>>, vector<256x128xf32>
    tpu.vector_store %arg10[%c0_10, %c0_11], %14 {strides = array<i32>} : memref<256x128xf32, #tpu.memory_space<vmem>>, vector<256x128xf32>,
    %c0_i32_12 = arith.constant 0 : i32
    %16 = arith.cmpi eq, %arg2, %c0_i32_12 : i32
    %17 = arith.extui %16 : i1 to i32
    %c0_i32_13 = arith.constant 0 : i32
    %18 = arith.cmpi ne, %17, %c0_i32_13 : i32
    scf.if %18 {
      %c0_14 = arith.constant 0 : index
      %c0_15 = arith.constant 0 : index
      %19 = vector.load %arg9[%c0_14, %c0_15] : memref<256x128xf32, #tpu.memory_space<vmem>>, vector<256x128xf32>
      %c0_16 = arith.constant 0 : index
      %c0_17 = arith.constant 0 : index
      %20 = vector.load %arg10[%c0_16, %c0_17] : memref<256x128xf32, #tpu.memory_space<vmem>>, vector<256x128xf32>
      %21 = arith.truncf %20 : vector<256x128xf32> to vector<256x128xbf16>
      %c0_18 = arith.constant 0 : index
      %c0_19 = arith.constant 0 : index
      %c0_20 = arith.constant 0 : index
      %22 = vector.load %arg5[%c0_18, %c0_19, %c0_20] : memref<1x128x128xbf16, #tpu.memory_space<vmem>>, vector<1x128x128xbf16>
      %23 = vector.shape_cast %22 : vector<1x128x128xbf16> to vector<128x128xbf16>
      %cst_21 = arith.constant dense<0.000000e+00> : vector<256x128xf32>
      %24 = tpu.matmul %21, %23, %cst_21 {dimension_numbers = #tpu.dot_dimension_numbers<[1], [0], [0], [1], [0, 0, 1, 1], [], []>} : vector<256x128xbf16>, vector<128x128xbf16>, vector<256x128xf32> -> vector<256x128xf32>
      %cst_22 = arith.constant 0.707106769 : f32
      %25 = vector.broadcast %cst_22 : f32 to vector<256x128xf32>
      %26 = arith.mulf %24, %25 : vector<256x128xf32>
      %27 = arith.addf %19, %26 : vector<256x128xf32>
      %c0_23 = arith.constant 0 : index
      %c0_24 = arith.constant 0 : index
      %28 = vector.load %arg9[%c0_23, %c0_24] : memref<256x128xf32, #tpu.memory_space<vmem>>, vector<256x128xf32>
      tpu.vector_store %arg9[%c0_23, %c0_24], %27 {strides = array<i32>} : memref<256x128xf32, #tpu.memory_space<vmem>>, vector<256x128xf32>,
    } else {
    }
    return
  }
  func.func @transform_0(%arg0: i32, %arg1: i32, %arg2: i32) -> (i32, i32, i32) {
    %c0_i32 = arith.constant 0 : i32
    return %arg1, %arg0, %arg2 : i32, i32, i32
  }
  func.func @transform_1(%arg0: i32, %arg1: i32, %arg2: i32) -> (i32, i32) {
    %c0_i32 = arith.constant 0 : i32
    %c0_i32_0 = arith.constant 0 : i32
    return %arg2, %c0_i32 : i32, i32
  }
  func.func @transform_2(%arg0: i32, %arg1: i32, %arg2: i32) -> (i32, i32, i32) {
    %c0_i32 = arith.constant 0 : i32
    %c0_i32_0 = arith.constant 0 : i32
    %c0_i32_1 = arith.constant 0 : i32
    return %arg1, %c0_i32, %c0_i32_0 : i32, i32, i32
  }
  func.func @transform_3(%arg0: i32, %arg1: i32, %arg2: i32) -> (i32, i32) {
    %c0_i32 = arith.constant 0 : i32
    %c0_i32_0 = arith.constant 0 : i32
    return %arg0, %c0_i32 : i32, i32
  }
  func.func @transform_4(%arg0: i32, %arg1: i32, %arg2: i32) -> (i32, i32) {
    %c0_i32 = arith.constant 0 : i32
    %c0_i32_0 = arith.constant 0 : i32
    %c0_i32_1 = arith.constant 0 : i32
    return %c0_i32, %c0_i32_0 : i32, i32
  }
  func.func @transform_5(%arg0: i32, %arg1: i32, %arg2: i32) -> (i32, i32) {
    %c0_i32 = arith.constant 0 : i32
    %c0_i32_0 = arith.constant 0 : i32
    %c0_i32_1 = arith.constant 0 : i32
    return %c0_i32, %c0_i32_0 : i32, i32
  }
  func.func @transform_6(%arg0: i32, %arg1: i32, %arg2: i32) -> (i32, i32) {
    %c0_i32 = arith.constant 0 : i32
    %c0_i32_0 = arith.constant 0 : i32
    return %arg0, %c0_i32 : i32, i32
  }
}

</mosaic_0001>

<llo_original>
// kernel: tpu_custom_call.1
$region0: #{tpu_custom_call.1}
  #allocation0 [shape = 'u32[]', space=smem, size = 0x4, offset = 0x4, fixed_abs, tag = 'smem constant byte address 0x4 - core index']
  #allocation1 [shape = 'u32[144,128]{1,0:T(1,128)}', space=vmem, size = 0x12000, scoped, tag = 'internal scratch']
  #allocation2 [shape = 'f32[256,128]{1,0:T(8,128)}', space=vmem, size = 0x20000, scoped, tag = 'scratch operand']
  %s0 = inlined_call_operand.hbm [shape: s8[2,256,256], index: 0, kind: input, shape index: {}]
  %s1 = inlined_call_operand.hbm [shape: bf16[256,128], index: 1, kind: input, shape index: {}]
  %s2 = inlined_call_operand.hbm [shape: bf16[2,128,128], index: 2, kind: input, shape index: {}]
  %s3 = inlined_call_operand.hbm [shape: bf16[256,128], index: 3, kind: input, shape index: {}]
  %s4 = inlined_call_operand.hbm [shape: bf16[128,128], index: 4, kind: input, shape index: {}]
  %s5 = inlined_call_operand.hbm [shape: f32[1,128], index: 5, kind: input, shape index: {}]
  %s6 = inlined_call_operand.hbm [shape: f32[256,128], index: 6, kind: output, shape index: {}]
  %s7 = sld [smem:[#allocation0]]
  $region93: #{tpu_custom_call.1} parent=0
    _
  %s9 = ssub.s32 1, %s7
  %s10 = scalar_select 0, %s9, %s7
  $region1: #{tpu_custom_call.1} parent=0
    #allocation3 [shape = 'u8[131072]{0}', space=vmem, size = 0x20000, scoped, tag = 'input window, operand 0']
    #allocation4 [shape = 's32[2]{0}', space=sflag, size = 0x8, scoped, tag = 'scoped memory for tpu_custom_call.1']
    #allocation5 [shape = 's32[2]{0}', space=sflag, size = 0x8, scoped, tag = 'scoped memory for tpu_custom_call.1']
    #allocation6 [shape = 'u8[65536]{0}', space=vmem, size = 0x10000, scoped, tag = 'input window, operand 1, single buffered']
    #allocation7 [shape = 's32[1]{0}', space=sflag, size = 0x4, scoped, tag = 'scoped memory for tpu_custom_call.1']
    #allocation8 [shape = 'u8[65536]{0}', space=vmem, size = 0x10000, scoped, tag = 'input window, operand 2']
    #allocation9 [shape = 'u8[65536]{0}', space=vmem, size = 0x10000, scoped, tag = 'input window, operand 3, single buffered']
    #allocation10 [shape = 'u8[32768]{0}', space=vmem, size = 0x8000, scoped, tag = 'input window, operand 4, single buffered']
    #allocation11 [shape = 's32[1]{0}', space=sflag, size = 0x4, scoped, tag = 'scoped memory for tpu_custom_call.1']
    #allocation12 [shape = 'u8[512]{0}', space=vmem, size = 0x400, scoped, tag = 'input window, operand 5, single buffered']
    #allocation13 [shape = 'u8[131072]{0}', space=vmem, size = 0x20000, scoped, tag = 'output window, operand 0, single buffered']
    %11 = vsyncpa [#allocation4], 0
    %s12 = scalar_lea.sflag [#allocation4], 1
    %13 = vsyncpa %s12, 0
    %14 = vsyncpa [#allocation7], 0
    %15 = vsyncpa [#allocation11], 0
    %16 = vsyncpa [#allocation5], 0
    loop: start=0, step=1, limit=4
    $region2: #{tpu_custom_call.1} parent=1 // loop_pre_header
      _
    $region3: #{tpu_custom_call.1} parent=1 // loop_header
      %s18 = sphi 0, %s22
      %p19 = scmp.ge.s32.totalorder %s18, 4
      %s25 = sphi 0, %s44
      %s26 = sphi 0, %s40
      %s27 = sphi 0, %s36
      %s28 = sphi 0, %s25
      %s29 = sphi 0, %s26
      %s30 = sphi 0, %s27
      %s31 = sphi 0, %s28
      %s32 = sphi 0, %s29
      %s33 = sphi 0, %s30
      %s51 = sphi 0, %s53
      %s54 = sphi 0, %s51
      %s55 = sphi 0, %s54
      %s71 = sphi 0, %s55
      %s77 = sphi 0, %s79
      %s80 = sphi 0, %s77
      %s81 = sphi 0, %s80
      %s97 = sphi 0, %s81
      %s103 = sphi 0, %s105
      %s106 = sphi 0, %s103
      %s107 = sphi 0, %s106
      %s123 = sphi 0, %s107
      %s129 = sphi 0, %s131
      %s132 = sphi 0, %s129
      %s133 = sphi 0, %s132
      %s149 = sphi 0, %s133
      %s153 = sphi 0, %s153
      %s155 = sphi 0, %s153
      %s156 = sphi 0, %s155
      %s170 = sphi 0, %s156
      %s174 = sphi 0, %s174
      %s176 = sphi 0, %s174
      %s177 = sphi 0, %s176
      %s191 = sphi 0, %s177
      %s197 = sphi 0, %s199
      %s200 = sphi 0, %s197
      %s201 = sphi 0, %s200
      %s217 = sphi 0, %s201
    $region4: #{tpu_custom_call.1} parent=1 // loop_header_branch
      %21 = sbr.rel (%p19) target = $region8
    $region5: #{tpu_custom_call.1} parent=1 // loop_body
      %s23 = ssub.s32 %s18, 1
      %s24 = ssub.s32 %s18, 2
      %s34 = sadd.s32 1, %s27
      %p35 = scmp.ge.s32.totalorder %s34, 1
      %s36 = scalar_select %p35, 0, %s34
      %s37 = sadd.s32 1, %s26
      %s38 = scalar_select %p35, %s37, %s26
      %p39 = scmp.ge.s32.totalorder %s38, 2
      %s40 = scalar_select %p39, 0, %s38
      %s41 = sadd.s32 1, %s25
      %s42 = scalar_select %p39, %s41, %s25
      %p43 = scmp.ge.s32.totalorder %s42, 1
      %s44 = scalar_select %p43, 0, %s42
      %s45 = ssub.s32 %s26, %s40
      %s46 = ssub.s32 %s25, %s44
      %s47 = sor.u32 %s45, %s46
      %s48 = ssub.s32 %s27, %s36
      %s49 = sor.u32 %s47, %s48
      %p50 = scmp.eq.s32.totalorder %s49, 0
      %s52 = sadd.s32 %s51, 1
      %s53 = scalar_select %p50, %s51, %s52
      %p56 = pneg %p50
      %p57 = scmp.eq.s32.totalorder %s18, 1
      %p58 = por %p56, %p57
      %p59 = scmp.ne.s32.totalorder %s51, %s54
      %p60 = scmp.eq.s32.totalorder %s18, 0
      %p61 = por %p59, %p60
      %p62 = scmp.ne.s32.totalorder %s51, %s54
      %p63 = scmp.eq.s32.totalorder %s23, 1
      %p64 = por %p62, %p63
      %p65 = scmp.ne.s32.totalorder %s54, %s55
      %p66 = scmp.eq.s32.totalorder %s23, 0
      %p67 = por %p65, %p66
      %p68 = scmp.ne.s32.totalorder %s54, %s55
      %p69 = scmp.eq.s32.totalorder %s24, 1
      %p70 = por %p68, %p69
      %p72 = scmp.ne.s32.totalorder %s55, %s71
      %p73 = scmp.eq.s32.totalorder %s24, 0
      %p74 = por %p72, %p73
      %s75 = ssub.s32 %s27, %s36
      %p76 = scmp.eq.s32.totalorder %s75, 0
      %s78 = sadd.s32 %s77, 1
      %s79 = scalar_select %p76, %s77, %s78
      %p82 = pneg %p76
      %p83 = scmp.eq.s32.totalorder %s18, 1
      %p84 = por %p82, %p83
      %p85 = scmp.ne.s32.totalorder %s77, %s80
      %p86 = scmp.eq.s32.totalorder %s18, 0
      %p87 = por %p85, %p86
      %p88 = scmp.ne.s32.totalorder %s77, %s80
      %p89 = scmp.eq.s32.totalorder %s23, 1
      %p90 = por %p88, %p89
      %p91 = scmp.ne.s32.totalorder %s80, %s81
      %p92 = scmp.eq.s32.totalorder %s23, 0
      %p93 = por %p91, %p92
      %p94 = scmp.ne.s32.totalorder %s80, %s81
      %p95 = scmp.eq.s32.totalorder %s24, 1
      %p96 = por %p94, %p95
      %p98 = scmp.ne.s32.totalorder %s81, %s97
      %p99 = scmp.eq.s32.totalorder %s24, 0
      %p100 = por %p98, %p99
      %s101 = ssub.s32 %s26, %s40
      %p102 = scmp.eq.s32.totalorder %s101, 0
      %s104 = sadd.s32 %s103, 1
      %s105 = scalar_select %p102, %s103, %s104
      %p108 = pneg %p102
      %p109 = scmp.eq.s32.totalorder %s18, 1
      %p110 = por %p108, %p109
      %p111 = scmp.ne.s32.totalorder %s103, %s106
      %p112 = scmp.eq.s32.totalorder %s18, 0
      %p113 = por %p111, %p112
      %p114 = scmp.ne.s32.totalorder %s103, %s106
      %p115 = scmp.eq.s32.totalorder %s23, 1
      %p116 = por %p114, %p115
      %p117 = scmp.ne.s32.totalorder %s106, %s107
      %p118 = scmp.eq.s32.totalorder %s23, 0
      %p119 = por %p117, %p118
      %p120 = scmp.ne.s32.totalorder %s106, %s107
      %p121 = scmp.eq.s32.totalorder %s24, 1
      %p122 = por %p120, %p121
      %p124 = scmp.ne.s32.totalorder %s107, %s123
      %p125 = scmp.eq.s32.totalorder %s24, 0
      %p126 = por %p124, %p125
      %s127 = ssub.s32 %s25, %s44
      %p128 = scmp.eq.s32.totalorder %s127, 0
      %s130 = sadd.s32 %s129, 1
      %s131 = scalar_select %p128, %s129, %s130
      %p134 = pneg %p128
      %p135 = scmp.eq.s32.totalorder %s18, 1
      %p136 = por %p134, %p135
      %p137 = scmp.ne.s32.totalorder %s129, %s132
      %p138 = scmp.eq.s32.totalorder %s18, 0
      %p139 = por %p137, %p138
      %p140 = scmp.ne.s32.totalorder %s129, %s132
      %p141 = scmp.eq.s32.totalorder %s23, 1
      %p142 = por %p140, %p141
      %p143 = scmp.ne.s32.totalorder %s132, %s133
      %p144 = scmp.eq.s32.totalorder %s23, 0
      %p145 = por %p143, %p144
      %p146 = scmp.ne.s32.totalorder %s132, %s133
      %p147 = scmp.eq.s32.totalorder %s24, 1
      %p148 = por %p146, %p147
      %p150 = scmp.ne.s32.totalorder %s133, %s149
      %p151 = scmp.eq.s32.totalorder %s24, 0
      %p152 = por %p150, %p151
      %s154 = sadd.s32 %s153, 1
      %p157 = scmp.eq.s32.totalorder %s18, 1
      %p158 = scmp.ne.s32.totalorder %s153, %s155
      %p159 = scmp.eq.s32.totalorder %s18, 0
      %p160 = por %p158, %p159
      %p161 = scmp.ne.s32.totalorder %s153, %s155
      %p162 = scmp.eq.s32.totalorder %s23, 1
      %p163 = por %p161, %p162
      %p164 = scmp.ne.s32.totalorder %s155, %s156
      %p165 = scmp.eq.s32.totalorder %s23, 0
      %p166 = por %p164, %p165
      %p167 = scmp.ne.s32.totalorder %s155, %s156
      %p168 = scmp.eq.s32.totalorder %s24, 1
      %p169 = por %p167, %p168
      %p171 = scmp.ne.s32.totalorder %s156, %s170
      %p172 = scmp.eq.s32.totalorder %s24, 0
      %p173 = por %p171, %p172
      %s175 = sadd.s32 %s174, 1
      %p178 = scmp.eq.s32.totalorder %s18, 1
      %p179 = scmp.ne.s32.totalorder %s174, %s176
      %p180 = scmp.eq.s32.totalorder %s18, 0
      %p181 = por %p179, %p180
      %p182 = scmp.ne.s32.totalorder %s174, %s176
      %p183 = scmp.eq.s32.totalorder %s23, 1
      %p184 = por %p182, %p183
      %p185 = scmp.ne.s32.totalorder %s176, %s177
      %p186 = scmp.eq.s32.totalorder %s23, 0
      %p187 = por %p185, %p186
      %p188 = scmp.ne.s32.totalorder %s176, %s177
      %p189 = scmp.eq.s32.totalorder %s24, 1
      %p190 = por %p188, %p189
      %p192 = scmp.ne.s32.totalorder %s177, %s191
      %p193 = scmp.eq.s32.totalorder %s24, 0
      %p194 = por %p192, %p193
      %s195 = ssub.s32 %s25, %s44
      %p196 = scmp.eq.s32.totalorder %s195, 0
      %s198 = sadd.s32 %s197, 1
      %s199 = scalar_select %p196, %s197, %s198
      %p202 = pneg %p196
      %p203 = scmp.eq.s32.totalorder %s18, 1
      %p204 = por %p202, %p203
      %p205 = scmp.ne.s32.totalorder %s197, %s200
      %p206 = scmp.eq.s32.totalorder %s18, 0
      %p207 = por %p205, %p206
      %p208 = scmp.ne.s32.totalorder %s197, %s200
      %p209 = scmp.eq.s32.totalorder %s23, 1
      %p210 = por %p208, %p209
      %p211 = scmp.ne.s32.totalorder %s200, %s201
      %p212 = scmp.eq.s32.totalorder %s23, 0
      %p213 = por %p211, %p212
      %p214 = scmp.ne.s32.totalorder %s200, %s201
      %p215 = scmp.eq.s32.totalorder %s24, 1
      %p216 = por %p214, %p215
      %p218 = scmp.ne.s32.totalorder %s201, %s217
      %p219 = scmp.eq.s32.totalorder %s24, 0
      %p220 = por %p218, %p219
      %p221 = scmp.le.s32.totalorder 1, %s18
      %p222 = scmp.lt.s32.totalorder %s18, 3
      %p223 = pnand %p221, %p222
      %p224 = pneg %p223
      // Predicated region
      $region9: #{tpu_custom_call.1} parent=5 // pred_check
        _
      $region10: #{tpu_custom_call.1} parent=5 // pred_check_branch
        %226 = sbr.rel (%p223) target = $region12
      $region11: #{tpu_custom_call.1} parent=5 // pred_region
        %s227 = ssub.s32 %s18, 1
        // Predicated region
        $region13: #{tpu_custom_call.1} parent=11 // pred_check
          %p228 = pneg %p93
        $region14: #{tpu_custom_call.1} parent=11 // pred_check_branch
          %230 = sbr.rel (%p228) target = $region16
        $region15: #{tpu_custom_call.1} parent=11 // pred_region
          %s231 = smul.u32 32, %s30
          %s233 = ssub.s32 2048, 2048
          %234 = vsyncadd [#allocation7], %s233
          %s235 = smul.addr %s231, 64
          %s236 = scalar_lea.hbm %s1, %s235
          %s237 = sshll.u32 [#allocation6], 4
          %s238 = int_to_ptr.vmem [resolvable:$true] %s237
          %243 = dma.hbm_to_vmem [thread:$0]  %s236, 2048, %s238, [#allocation7], 64, 64, 4
        $region16: #{tpu_custom_call.1} parent=11 // pred_fallthru
          _
        // Predicated region
        $region17: #{tpu_custom_call.1} parent=11 // pred_check
          %p244 = pneg %p145
        $region18: #{tpu_custom_call.1} parent=11 // pred_check_branch
          %246 = sbr.rel (%p244) target = $region20
        $region19: #{tpu_custom_call.1} parent=11 // pred_region
          %s247 = smul.u32 32, %s28
          %s249 = ssub.s32 2048, 2048
          %250 = vsyncadd [#allocation7], %s249
          %s251 = smul.addr %s247, 64
          %s252 = scalar_lea.hbm %s3, %s251
          %s253 = sshll.u32 [#allocation9], 4
          %s254 = int_to_ptr.vmem [resolvable:$true] %s253
          %259 = dma.hbm_to_vmem [thread:$0]  %s252, 2048, %s254, [#allocation7], 64, 64, 4
        $region20: #{tpu_custom_call.1} parent=11 // pred_fallthru
          _
        // Predicated region
        $region21: #{tpu_custom_call.1} parent=11 // pred_check
          %p260 = pneg %p166
        $region22: #{tpu_custom_call.1} parent=11 // pred_check_branch
          %262 = sbr.rel (%p260) target = $region24
        $region23: #{tpu_custom_call.1} parent=11 // pred_region
          %s264 = ssub.s32 1024, 1024
          %265 = vsyncadd [#allocation11], %s264
          %s266 = sshll.u32 [#allocation10], 4
          %s267 = int_to_ptr.vmem [resolvable:$true] %s266
          %272 = dma.hbm_to_vmem [thread:$0]  %s4, 1024, %s267, [#allocation11], 64, 64, 4
        $region24: #{tpu_custom_call.1} parent=11 // pred_fallthru
          _
        // Predicated region
        $region25: #{tpu_custom_call.1} parent=11 // pred_check
          %p273 = pneg %p187
        $region26: #{tpu_custom_call.1} parent=11 // pred_check_branch
          %275 = sbr.rel (%p273) target = $region28
        $region27: #{tpu_custom_call.1} parent=11 // pred_region
          %s277 = ssub.s32 16, 16
          %278 = vsyncadd [#allocation11], %s277
          %s280 = sshll.u32 [#allocation12], 4
          %s281 = int_to_ptr.vmem [resolvable:$true] %s280
          %283 = dma.hbm_to_vmem [thread:$0]  %s5, 16, %s281, [#allocation11]
        $region28: #{tpu_custom_call.1} parent=11 // pred_fallthru
          _
      $region12: #{tpu_custom_call.1} parent=5 // pred_fallthru
        _
      %p284 = scmp.lt.s32.totalorder %s18, 2
      // Predicated region
      $region29: #{tpu_custom_call.1} parent=5 // pred_check
        %p285 = pneg %p284
      $region30: #{tpu_custom_call.1} parent=5 // pred_check_branch
        %287 = sbr.rel (%p285) target = $region32
      $region31: #{tpu_custom_call.1} parent=5 // pred_region
        // Predicated region
        $region33: #{tpu_custom_call.1} parent=31 // pred_check
          %p288 = pneg %p61
        $region34: #{tpu_custom_call.1} parent=31 // pred_check_branch
          %290 = sbr.rel (%p288) target = $region36
        $region35: #{tpu_custom_call.1} parent=31 // pred_region
          %s291 = sand.u32 %s18, 1
          %s292 = scalar_lea.sflag [#allocation4], %s291
          %s293 = sand.u32 %s51, 1
          %s294 = smul.addr %s293, 128
          %s295 = scalar_lea.vmem [#allocation3], %s294
          %s296 = smul.u32 8, %s25
          %s297 = smul.u32 2, %s27
          %s299 = ssub.s32 2048, 2048
          %300 = vsyncadd %s292, %s299
          %s301 = smul.addr %s296, 2
          %s302 = sadd.s32 %s297, %s301
          %s303 = smul.addr %s26, 16
          %s304 = sadd.s32 %s302, %s303
          %s305 = smul.addr %s304, 128
          %s306 = scalar_lea.hbm %s0, %s305
          %s307 = sshll.u32 %s295, 4
          %s308 = int_to_ptr.vmem [resolvable:$true] %s307
          %313 = dma.hbm_to_vmem [thread:$0]  %s306, 2048, %s308, %s292, 256, 256, 16
        $region36: #{tpu_custom_call.1} parent=31 // pred_fallthru
          _
        // Predicated region
        $region37: #{tpu_custom_call.1} parent=31 // pred_check
          %p314 = pneg %p113
        $region38: #{tpu_custom_call.1} parent=31 // pred_check_branch
          %316 = sbr.rel (%p314) target = $region40
        $region39: #{tpu_custom_call.1} parent=31 // pred_region
          %s317 = sand.u32 %s18, 1
          %s318 = scalar_lea.sflag [#allocation4], %s317
          %s319 = sand.u32 %s103, 1
          %s320 = smul.addr %s319, 64
          %s321 = scalar_lea.vmem [#allocation8], %s320
          %s323 = ssub.s32 1024, 1024
          %324 = vsyncadd %s318, %s323
          %s325 = smul.addr %s26, 16
          %s326 = smul.addr %s325, 64
          %s327 = scalar_lea.hbm %s2, %s326
          %s328 = sshll.u32 %s321, 4
          %s329 = int_to_ptr.vmem [resolvable:$true] %s328
          %334 = dma.hbm_to_vmem [thread:$0]  %s327, 1024, %s329, %s318, 64, 64, 4
        $region40: #{tpu_custom_call.1} parent=31 // pred_fallthru
          _
      $region32: #{tpu_custom_call.1} parent=5 // pred_fallthru
        _
      %p335 = scmp.le.s32.totalorder 1, %s18
      %p336 = scmp.lt.s32.totalorder %s18, 3
      %p337 = pnand %p335, %p336
      %p338 = pneg %p337
      // Predicated region
      $region41: #{tpu_custom_call.1} parent=5 // pred_check
        _
      $region42: #{tpu_custom_call.1} parent=5 // pred_check_branch
        %340 = sbr.rel (%p337) target = $region44
      $region43: #{tpu_custom_call.1} parent=5 // pred_region
        %s341 = ssub.s32 %s18, 1
        %s342 = sand.u32 %s23, 1
        %s343 = scalar_lea.sflag [#allocation4], %s342
        %s344 = sand.u32 %s54, 1
        %s345 = smul.addr %s344, 128
        %s346 = scalar_lea.vmem [#allocation3], %s345
        // Predicated region
        $region45: #{tpu_custom_call.1} parent=43 // pred_check
          %p347 = pneg %p67
        $region46: #{tpu_custom_call.1} parent=43 // pred_check_branch
          %349 = sbr.rel (%p347) target = $region48
        $region47: #{tpu_custom_call.1} parent=43 // pred_region
          %350 = dma.done %s343, 2048
        $region48: #{tpu_custom_call.1} parent=43 // pred_fallthru
          _
        // Predicated region
        $region49: #{tpu_custom_call.1} parent=43 // pred_check
          %p351 = pneg %p93
        $region50: #{tpu_custom_call.1} parent=43 // pred_check_branch
          %353 = sbr.rel (%p351) target = $region52
        $region51: #{tpu_custom_call.1} parent=43 // pred_region
          %354 = dma.done [#allocation7], 2048
        $region52: #{tpu_custom_call.1} parent=43 // pred_fallthru
          _
        %s355 = sand.u32 %s23, 1
        %s356 = scalar_lea.sflag [#allocation4], %s355
        %s357 = sand.u32 %s106, 1
        %s358 = smul.addr %s357, 64
        %s359 = scalar_lea.vmem [#allocation8], %s358
        // Predicated region
        $region53: #{tpu_custom_call.1} parent=43 // pred_check
          %p360 = pneg %p119
        $region54: #{tpu_custom_call.1} parent=43 // pred_check_branch
          %362 = sbr.rel (%p360) target = $region56
        $region55: #{tpu_custom_call.1} parent=43 // pred_region
          %363 = dma.done %s356, 1024
        $region56: #{tpu_custom_call.1} parent=43 // pred_fallthru
          _
        // Predicated region
        $region57: #{tpu_custom_call.1} parent=43 // pred_check
          %p364 = pneg %p145
        $region58: #{tpu_custom_call.1} parent=43 // pred_check_branch
          %366 = sbr.rel (%p364) target = $region60
        $region59: #{tpu_custom_call.1} parent=43 // pred_region
          %367 = dma.done [#allocation7], 2048
        $region60: #{tpu_custom_call.1} parent=43 // pred_fallthru
          _
        // Predicated region
        $region61: #{tpu_custom_call.1} parent=43 // pred_check
          %p368 = pneg %p166
        $region62: #{tpu_custom_call.1} parent=43 // pred_check_branch
          %370 = sbr.rel (%p368) target = $region64
        $region63: #{tpu_custom_call.1} parent=43 // pred_region
          %371 = dma.done [#allocation11], 1024
        $region64: #{tpu_custom_call.1} parent=43 // pred_fallthru
          _
        // Predicated region
        $region65: #{tpu_custom_call.1} parent=43 // pred_check
          %p372 = pneg %p187
        $region66: #{tpu_custom_call.1} parent=43 // pred_check_branch
          %374 = sbr.rel (%p372) target = $region68
        $region67: #{tpu_custom_call.1} parent=43 // pred_region
          %375 = dma.done [#allocation11], 16
        $region68: #{tpu_custom_call.1} parent=43 // pred_fallthru
          _
        %s376 = sand.u32 %s23, 1
        %s377 = scalar_lea.sflag [#allocation4], %s376
        %s378 = sand.u32 %s54, 1
        %s379 = smul.addr %s378, 128
        %s380 = scalar_lea.vmem [#allocation3], %s379
        %p381 = pneg %p67
        %p382 = pneg %p64
        %p383 = pneg %p93
        %p384 = pneg %p90
        %s385 = sand.u32 %s23, 1
        %s386 = scalar_lea.sflag [#allocation4], %s385
        %s387 = sand.u32 %s106, 1
        %s388 = smul.addr %s387, 64
        %s389 = scalar_lea.vmem [#allocation8], %s388
        %p390 = pneg %p119
        %p391 = pneg %p116
        %p392 = pneg %p145
        %p393 = pneg %p142
        %p394 = pneg %p166
        %p395 = pneg %p163
        %p396 = pneg %p187
        %p397 = pneg %p184
        %p398 = pneg %p213
        %p399 = pneg %p210
        %s400 = smul.u32 8, %s28
        %s401 = smul.u32 2, %s30
        %s402 = smul.u32 32, %s30
        %s403 = smul.u32 32, %s28
        %s404 = smul.u32 32, %s28
        %p406 = scmp.eq.s32.totalorder %s29, 0
        %p407 = scmp.eq.s32.totalorder %s30, 0
        %p408 = pnand %p406, %p407
        %p409 = pneg %p408
        // Predicated region
        $region69: #{tpu_custom_call.1} parent=43 // pred_check
          _
        $region70: #{tpu_custom_call.1} parent=43 // pred_check_branch
          %411 = sbr.rel (%p408) target = $region72
        $region71: #{tpu_custom_call.1} parent=43 // pred_region
          %v412 = vld [vmem:[#allocation9] sm:$0xf]
          %v413 = vld [vmem:[#allocation9 + $0x4] sm:$0xf]
          %v414 = vld [vmem:[#allocation9 + $0x8] sm:$0xf]
          %v415 = vld [vmem:[#allocation9 + $0xc] sm:$0xf]
          %v416 = vld [vmem:[#allocation9 + $0x10] sm:$0xf]
          %v417 = vld [vmem:[#allocation9 + $0x14] sm:$0xf]
          %v418 = vld [vmem:[#allocation9 + $0x18] sm:$0xf]
          %v419 = vld [vmem:[#allocation9 + $0x1c] sm:$0xf]
          %v420 = vld [vmem:[#allocation9 + $0x20] sm:$0xf]
          %v421 = vld [vmem:[#allocation9 + $0x24] sm:$0xf]
          %v422 = vld [vmem:[#allocation9 + $0x28] sm:$0xf]
          %v423 = vld [vmem:[#allocation9 + $0x2c] sm:$0xf]
          %v424 = vld [vmem:[#allocation9 + $0x30] sm:$0xf]
          %v425 = vld [vmem:[#allocation9 + $0x34] sm:$0xf]
          %v426 = vld [vmem:[#allocation9 + $0x38] sm:$0xf]
          %v427 = vld [vmem:[#allocation9 + $0x3c] sm:$0xf]
          %v428 = vld [vmem:[#allocation9 + $0x40] sm:$0xf]
          %v429 = vld [vmem:[#allocation9 + $0x44] sm:$0xf]
          %v430 = vld [vmem:[#allocation9 + $0x48] sm:$0xf]
          %v431 = vld [vmem:[#allocation9 + $0x4c] sm:$0xf]
          %v432 = vld [vmem:[#allocation9 + $0x50] sm:$0xf]
          %v433 = vld [vmem:[#allocation9 + $0x54] sm:$0xf]
          %v434 = vld [vmem:[#allocation9 + $0x58] sm:$0xf]
          %v435 = vld [vmem:[#allocation9 + $0x5c] sm:$0xf]
          %v436 = vld [vmem:[#allocation9 + $0x60] sm:$0xf]
          %v437 = vld [vmem:[#allocation9 + $0x64] sm:$0xf]
          %v438 = vld [vmem:[#allocation9 + $0x68] sm:$0xf]
          %v439 = vld [vmem:[#allocation9 + $0x6c] sm:$0xf]
          %v440 = vld [vmem:[#allocation9 + $0x70] sm:$0xf]
          %v441 = vld [vmem:[#allocation9 + $0x74] sm:$0xf]
          %v442 = vld [vmem:[#allocation9 + $0x78] sm:$0xf]
          %v443 = vld [vmem:[#allocation9 + $0x7c] sm:$0xf]
          %v444 = vld [vmem:[#allocation10] sm:$0xf]
          %v445 = vld [vmem:[#allocation10 + $0x4] sm:$0xf]
          %v446 = vld [vmem:[#allocation10 + $0x8] sm:$0xf]
          %v447 = vld [vmem:[#allocation10 + $0xc] sm:$0xf]
          %v448 = vld [vmem:[#allocation10 + $0x10] sm:$0xf]
          %v449 = vld [vmem:[#allocation10 + $0x14] sm:$0xf]
          %v450 = vld [vmem:[#allocation10 + $0x18] sm:$0xf]
          %v451 = vld [vmem:[#allocation10 + $0x1c] sm:$0xf]
          %v452 = vld [vmem:[#allocation10 + $0x20] sm:$0xf]
          %v453 = vld [vmem:[#allocation10 + $0x24] sm:$0xf]
          %v454 = vld [vmem:[#allocation10 + $0x28] sm:$0xf]
          %v455 = vld [vmem:[#allocation10 + $0x2c] sm:$0xf]
          %v456 = vld [vmem:[#allocation10 + $0x30] sm:$0xf]
          %v457 = vld [vmem:[#allocation10 + $0x34] sm:$0xf]
          %v458 = vld [vmem:[#allocation10 + $0x38] sm:$0xf]
          %v459 = vld [vmem:[#allocation10 + $0x3c] sm:$0xf]
          %v492 = vunpack.c.l.b16 %v412
          %v493 = vunpack.c.l.b16 %v413
          %v494 = vunpack.c.l.b16 %v414
          %v495 = vunpack.c.l.b16 %v415
          %v496 = vunpack.c.l.b16 %v416
          %v497 = vunpack.c.l.b16 %v417
          %v498 = vunpack.c.l.b16 %v418
          %v499 = vunpack.c.l.b16 %v419
          %v500 = vunpack.c.l.b16 %v420
          %v501 = vunpack.c.l.b16 %v421
          %v502 = vunpack.c.l.b16 %v422
          %v503 = vunpack.c.l.b16 %v423
          %v504 = vunpack.c.l.b16 %v424
          %v505 = vunpack.c.l.b16 %v425
          %v506 = vunpack.c.l.b16 %v426
          %v507 = vunpack.c.l.b16 %v427
          %v508 = vunpack.c.l.b16 %v428
          %v509 = vunpack.c.l.b16 %v429
          %v510 = vunpack.c.l.b16 %v430
          %v511 = vunpack.c.l.b16 %v431
          %v512 = vunpack.c.l.b16 %v432
          %v513 = vunpack.c.l.b16 %v433
          %v514 = vunpack.c.l.b16 %v434
          %v515 = vunpack.c.l.b16 %v435
          %v516 = vunpack.c.l.b16 %v436
          %v517 = vunpack.c.l.b16 %v437
          %v518 = vunpack.c.l.b16 %v438
          %v519 = vunpack.c.l.b16 %v439
          %v520 = vunpack.c.l.b16 %v440
          %v521 = vunpack.c.l.b16 %v441
          %v522 = vunpack.c.l.b16 %v442
          %v523 = vunpack.c.l.b16 %v443
          %v524 = vpack.c.b16 %v493, %v492
          %v525 = vpack.c.b16 %v495, %v494
          %v526 = vpack.c.b16 %v497, %v496
          %v527 = vpack.c.b16 %v499, %v498
          %v528 = vpack.c.b16 %v501, %v500
          %v529 = vpack.c.b16 %v503, %v502
          %v530 = vpack.c.b16 %v505, %v504
          %v531 = vpack.c.b16 %v507, %v506
          %v532 = vpack.c.b16 %v509, %v508
          %v533 = vpack.c.b16 %v511, %v510
          %v534 = vpack.c.b16 %v513, %v512
          %v535 = vpack.c.b16 %v515, %v514
          %v536 = vpack.c.b16 %v517, %v516
          %v537 = vpack.c.b16 %v519, %v518
          %v538 = vpack.c.b16 %v521, %v520
          %v539 = vpack.c.b16 %v523, %v522
          %v572 = vunpack.c.l.b16 %v444
          %v573 = vunpack.c.l.b16 %v445
          %v574 = vunpack.c.l.b16 %v446
          %v575 = vunpack.c.l.b16 %v447
          %v576 = vunpack.c.l.b16 %v448
          %v577 = vunpack.c.l.b16 %v449
          %v578 = vunpack.c.l.b16 %v450
          %v579 = vunpack.c.l.b16 %v451
          %v580 = vunpack.c.l.b16 %v452
          %v581 = vunpack.c.l.b16 %v453
          %v582 = vunpack.c.l.b16 %v454
          %v583 = vunpack.c.l.b16 %v455
          %v584 = vunpack.c.l.b16 %v456
          %v585 = vunpack.c.l.b16 %v457
          %v586 = vunpack.c.l.b16 %v458
          %v587 = vunpack.c.l.b16 %v459
          %v588 = vpack.c.b16 %v573, %v572
          %v589 = vpack.c.b16 %v575, %v574
          %v590 = vpack.c.b16 %v577, %v576
          %v591 = vpack.c.b16 %v579, %v578
          %v592 = vpack.c.b16 %v581, %v580
          %v593 = vpack.c.b16 %v583, %v582
          %v594 = vpack.c.b16 %v585, %v584
          %v595 = vpack.c.b16 %v587, %v586
          %604 = vmatprep.subr.bf16.mxu0 0
          %605 = vmatpush1.bf16.msra.mxu0 %v588
          %606 = vmatprep.subr.bf16.mxu0 0
          %607 = vmatpush1.bf16.msra.mxu0 %v589
          %608 = vmatprep.subr.bf16.mxu0 0
          %609 = vmatpush1.bf16.msra.mxu0 %v590
          %610 = vmatprep.subr.bf16.mxu0 0
          %611 = vmatpush1.bf16.msra.mxu0 %v591
          %612 = vmatprep.subr.bf16.mxu0 0
          %613 = vmatpush1.bf16.msra.mxu0 %v592
          %614 = vmatprep.subr.bf16.mxu0 0
          %615 = vmatpush1.bf16.msra.mxu0 %v593
          %616 = vmatprep.subr.bf16.mxu0 0
          %617 = vmatpush1.bf16.msra.mxu0 %v594
          %618 = vmatprep.subr.bf16.mxu0 0
          %619 = vmatpush1.bf16.msra.mxu0 %v595
          %620 = vmatprep.subr.bf16.mxu0 0
          %621 = vmatpush1.bf16.msra.mxu0 0
          %622 = vmatprep.subr.bf16.mxu0 0
          %623 = vmatpush1.bf16.msra.mxu0 0
          %624 = vmatprep.subr.bf16.mxu0 0
          %625 = vmatpush1.bf16.msra.mxu0 0
          %626 = vmatprep.subr.bf16.mxu0 0
          %627 = vmatpush1.bf16.msra.mxu0 0
          %628 = vmatprep.subr.bf16.mxu0 0
          %629 = vmatpush1.bf16.msra.mxu0 0
          %630 = vmatprep.subr.bf16.mxu0 0
          %631 = vmatpush1.bf16.msra.mxu0 0
          %632 = vmatprep.subr.bf16.mxu0 0
          %633 = vmatpush1.bf16.msra.mxu0 0
          %634 = vmatprep.subr.bf16.mxu0 0
          %635 = vmatpush1.bf16.msra.mxu0 0
          %636 = vmatprep.mubr.bf16.mxu0 0
          %637 = vmatmul.mubr.bf16.gmra.mrb[0].mxu0 %v524
          %v638 = vpop.f32.mrb[0].mxu0
          %v639 = vadd.f32 0.0, %v638
          %v640 = vpop.f32.mrb[0].mxu0
          %v641 = vpop.f32.mrb[0].mxu0
          %v642 = vadd.f32 0.0, %v641
          %v643 = vpop.f32.mrb[0].mxu0
          %644 = vmatprep.mubr.bf16.mxu0 0
          %645 = vmatmul.mubr.bf16.gmra.mrb[0].mxu0 %v525
          %v646 = vpop.f32.mrb[0].mxu0
          %v647 = vadd.f32 0.0, %v646
          %v648 = vpop.f32.mrb[0].mxu0
          %v649 = vpop.f32.mrb[0].mxu0
          %v650 = vadd.f32 0.0, %v649
          %v651 = vpop.f32.mrb[0].mxu0
          %652 = vmatprep.mubr.bf16.mxu0 0
          %653 = vmatmul.mubr.bf16.gmra.mrb[0].mxu0 %v526
          %v654 = vpop.f32.mrb[0].mxu0
          %v655 = vadd.f32 0.0, %v654
          %v656 = vpop.f32.mrb[0].mxu0
          %v657 = vpop.f32.mrb[0].mxu0
          %v658 = vadd.f32 0.0, %v657
          %v659 = vpop.f32.mrb[0].mxu0
          %660 = vmatprep.mubr.bf16.mxu0 0
          %661 = vmatmul.mubr.bf16.gmra.mrb[0].mxu0 %v527
          %v662 = vpop.f32.mrb[0].mxu0
          %v663 = vadd.f32 0.0, %v662
          %v664 = vpop.f32.mrb[0].mxu0
          %v665 = vpop.f32.mrb[0].mxu0
          %v666 = vadd.f32 0.0, %v665
          %v667 = vpop.f32.mrb[0].mxu0
          %668 = vmatprep.mubr.bf16.mxu0 0
          %669 = vmatmul.mubr.bf16.gmra.mrb[0].mxu0 %v528
          %v670 = vpop.f32.mrb[0].mxu0
          %v671 = vadd.f32 0.0, %v670
          %v672 = vpop.f32.mrb[0].mxu0
          %v673 = vpop.f32.mrb[0].mxu0
          %v674 = vadd.f32 0.0, %v673
          %v675 = vpop.f32.mrb[0].mxu0
          %676 = vmatprep.mubr.bf16.mxu0 0
          %677 = vmatmul.mubr.bf16.gmra.mrb[0].mxu0 %v529
          %v678 = vpop.f32.mrb[0].mxu0
          %v679 = vadd.f32 0.0, %v678
          %v680 = vpop.f32.mrb[0].mxu0
          %v681 = vpop.f32.mrb[0].mxu0
          %v682 = vadd.f32 0.0, %v681
          %v683 = vpop.f32.mrb[0].mxu0
          %684 = vmatprep.mubr.bf16.mxu0 0
          %685 = vmatmul.mubr.bf16.gmra.mrb[0].mxu0 %v530
          %v686 = vpop.f32.mrb[0].mxu0
          %v687 = vadd.f32 0.0, %v686
          %v688 = vpop.f32.mrb[0].mxu0
          %v689 = vpop.f32.mrb[0].mxu0
          %v690 = vadd.f32 0.0, %v689
          %v691 = vpop.f32.mrb[0].mxu0
          %692 = vmatprep.mubr.bf16.mxu0 0
          %693 = vmatmul.mubr.bf16.gmra.mrb[0].mxu0 %v531
          %v694 = vpop.f32.mrb[0].mxu0
          %v695 = vadd.f32 0.0, %v694
          %v696 = vpop.f32.mrb[0].mxu0
          %v697 = vpop.f32.mrb[0].mxu0
          %v698 = vadd.f32 0.0, %v697
          %v699 = vpop.f32.mrb[0].mxu0
          %700 = vmatprep.mubr.bf16.mxu0 0
          %701 = vmatmul.mubr.bf16.gmra.mrb[0].mxu0 %v532
          %v702 = vpop.f32.mrb[0].mxu0
          %v703 = vadd.f32 0.0, %v702
          %v704 = vpop.f32.mrb[0].mxu0
          %v705 = vpop.f32.mrb[0].mxu0
          %v706 = vadd.f32 0.0, %v705
          %v707 = vpop.f32.mrb[0].mxu0
          %708 = vmatprep.mubr.bf16.mxu0 0
          %709 = vmatmul.mubr.bf16.gmra.mrb[0].mxu0 %v533
          %v710 = vpop.f32.mrb[0].mxu0
          %v711 = vadd.f32 0.0, %v710
          %v712 = vpop.f32.mrb[0].mxu0
          %v713 = vpop.f32.mrb[0].mxu0
          %v714 = vadd.f32 0.0, %v713
          %v715 = vpop.f32.mrb[0].mxu0
          %716 = vmatprep.mubr.bf16.mxu0 0
          %717 = vmatmul.mubr.bf16.gmra.mrb[0].mxu0 %v534
          %v718 = vpop.f32.mrb[0].mxu0
          %v719 = vadd.f32 0.0, %v718
          %v720 = vpop.f32.mrb[0].mxu0
          %v721 = vpop.f32.mrb[0].mxu0
          %v722 = vadd.f32 0.0, %v721
          %v723 = vpop.f32.mrb[0].mxu0
          %724 = vmatprep.mubr.bf16.mxu0 0
          %725 = vmatmul.mubr.bf16.gmra.mrb[0].mxu0 %v535
          %v726 = vpop.f32.mrb[0].mxu0
          %v727 = vadd.f32 0.0, %v726
          %v728 = vpop.f32.mrb[0].mxu0
          %v729 = vpop.f32.mrb[0].mxu0
          %v730 = vadd.f32 0.0, %v729
          %v731 = vpop.f32.mrb[0].mxu0
          %732 = vmatprep.mubr.bf16.mxu0 0
          %733 = vmatmul.mubr.bf16.gmra.mrb[0].mxu0 %v536
          %v734 = vpop.f32.mrb[0].mxu0
          %v735 = vadd.f32 0.0, %v734
          %v736 = vpop.f32.mrb[0].mxu0
          %v737 = vpop.f32.mrb[0].mxu0
          %v738 = vadd.f32 0.0, %v737
          %v739 = vpop.f32.mrb[0].mxu0
          %740 = vmatprep.mubr.bf16.mxu0 0
          %741 = vmatmul.mubr.bf16.gmra.mrb[0].mxu0 %v537
          %v742 = vpop.f32.mrb[0].mxu0
          %v743 = vadd.f32 0.0, %v742
          %v744 = vpop.f32.mrb[0].mxu0
          %v745 = vpop.f32.mrb[0].mxu0
          %v746 = vadd.f32 0.0, %v745
          %v747 = vpop.f32.mrb[0].mxu0
          %748 = vmatprep.mubr.bf16.mxu0 0
          %749 = vmatmul.mubr.bf16.gmra.mrb[0].mxu0 %v538
          %v750 = vpop.f32.mrb[0].mxu0
          %v751 = vadd.f32 0.0, %v750
          %v752 = vpop.f32.mrb[0].mxu0
          %v753 = vpop.f32.mrb[0].mxu0
          %v754 = vadd.f32 0.0, %v753
          %v755 = vpop.f32.mrb[0].mxu0
          %756 = vmatprep.mubr.bf16.mxu0 0
          %757 = vmatmul.mubr.bf16.gmra.mrb[0].mxu0 %v539
          %v758 = vpop.f32.mrb[0].mxu0
          %v759 = vadd.f32 0.0, %v758
          %v760 = vpop.f32.mrb[0].mxu0
          %v761 = vpop.f32.mrb[0].mxu0
          %v762 = vadd.f32 0.0, %v761
          %v763 = vpop.f32.mrb[0].mxu0
          %764 = vdwg.mxu0
          %v765 = vmul.f32 %v639, 0.70710677
          %v766 = vmul.f32 %v642, 0.70710677
          %v767 = vmul.f32 %v647, 0.70710677
          %v768 = vmul.f32 %v650, 0.70710677
          %v769 = vmul.f32 %v655, 0.70710677
          %v770 = vmul.f32 %v658, 0.70710677
          %v771 = vmul.f32 %v663, 0.70710677
          %v772 = vmul.f32 %v666, 0.70710677
          %v773 = vmul.f32 %v671, 0.70710677
          %v774 = vmul.f32 %v674, 0.70710677
          %v775 = vmul.f32 %v679, 0.70710677
          %v776 = vmul.f32 %v682, 0.70710677
          %v777 = vmul.f32 %v687, 0.70710677
          %v778 = vmul.f32 %v690, 0.70710677
          %v779 = vmul.f32 %v695, 0.70710677
          %v780 = vmul.f32 %v698, 0.70710677
          %v781 = vmul.f32 %v703, 0.70710677
          %v782 = vmul.f32 %v706, 0.70710677
          %v783 = vmul.f32 %v711, 0.70710677
          %v784 = vmul.f32 %v714, 0.70710677
          %v785 = vmul.f32 %v719, 0.70710677
          %v786 = vmul.f32 %v722, 0.70710677
          %v787 = vmul.f32 %v727, 0.70710677
          %v788 = vmul.f32 %v730, 0.70710677
          %v789 = vmul.f32 %v735, 0.70710677
          %v790 = vmul.f32 %v738, 0.70710677
          %v791 = vmul.f32 %v743, 0.70710677
          %v792 = vmul.f32 %v746, 0.70710677
          %v793 = vmul.f32 %v751, 0.70710677
          %v794 = vmul.f32 %v754, 0.70710677
          %v795 = vmul.f32 %v759, 0.70710677
          %v796 = vmul.f32 %v762, 0.70710677
          %v797 = vld [vmem:[#allocation12] sm:$0x1]
          %v799 = vlaneseq
          %v800 = vshrl.u32 %v799, 7
          %v801 = vsub.s32 0, %v800
          %v802 = vrot.slane %v797, %v801
          %v804 = vadd.f32 %v765, %v802
          %v805 = vadd.f32 %v766, %v802
          %v806 = vadd.f32 %v767, %v802
          %v807 = vadd.f32 %v768, %v802
          %v808 = vadd.f32 %v769, %v802
          %v809 = vadd.f32 %v770, %v802
          %v810 = vadd.f32 %v771, %v802
          %v811 = vadd.f32 %v772, %v802
          %v812 = vadd.f32 %v773, %v802
          %v813 = vadd.f32 %v774, %v802
          %v814 = vadd.f32 %v775, %v802
          %v815 = vadd.f32 %v776, %v802
          %v816 = vadd.f32 %v777, %v802
          %v817 = vadd.f32 %v778, %v802
          %v818 = vadd.f32 %v779, %v802
          %v819 = vadd.f32 %v780, %v802
          %v820 = vadd.f32 %v781, %v802
          %v821 = vadd.f32 %v782, %v802
          %v822 = vadd.f32 %v783, %v802
          %v823 = vadd.f32 %v784, %v802
          %v824 = vadd.f32 %v785, %v802
          %v825 = vadd.f32 %v786, %v802
          %v826 = vadd.f32 %v787, %v802
          %v827 = vadd.f32 %v788, %v802
          %v828 = vadd.f32 %v789, %v802
          %v829 = vadd.f32 %v790, %v802
          %v830 = vadd.f32 %v791, %v802
          %v831 = vadd.f32 %v792, %v802
          %v832 = vadd.f32 %v793, %v802
          %v833 = vadd.f32 %v794, %v802
          %v834 = vadd.f32 %v795, %v802
          %v835 = vadd.f32 %v796, %v802
          %836 = vst [vmem:[#allocation13] sm:$0xff] %v804
          %837 = vst [vmem:[#allocation13 + $0x8] sm:$0xff] %v805
          %838 = vst [vmem:[#allocation13 + $0x10] sm:$0xff] %v806
          %839 = vst [vmem:[#allocation13 + $0x18] sm:$0xff] %v807
          %840 = vst [vmem:[#allocation13 + $0x20] sm:$0xff] %v808
          %841 = vst [vmem:[#allocation13 + $0x28] sm:$0xff] %v809
          %842 = vst [vmem:[#allocation13 + $0x30] sm:$0xff] %v810
          %843 = vst [vmem:[#allocation13 + $0x38] sm:$0xff] %v811
          %844 = vst [vmem:[#allocation13 + $0x40] sm:$0xff] %v812
          %845 = vst [vmem:[#allocation13 + $0x48] sm:$0xff] %v813
          %846 = vst [vmem:[#allocation13 + $0x50] sm:$0xff] %v814
          %847 = vst [vmem:[#allocation13 + $0x58] sm:$0xff] %v815
          %848 = vst [vmem:[#allocation13 + $0x60] sm:$0xff] %v816
          %849 = vst [vmem:[#allocation13 + $0x68] sm:$0xff] %v817
          %850 = vst [vmem:[#allocation13 + $0x70] sm:$0xff] %v818
          %851 = vst [vmem:[#allocation13 + $0x78] sm:$0xff] %v819
          %852 = vst [vmem:[#allocation13 + $0x80] sm:$0xff] %v820
          %853 = vst [vmem:[#allocation13 + $0x88] sm:$0xff] %v821
          %854 = vst [vmem:[#allocation13 + $0x90] sm:$0xff] %v822
          %855 = vst [vmem:[#allocation13 + $0x98] sm:$0xff] %v823
          %856 = vst [vmem:[#allocation13 + $0xa0] sm:$0xff] %v824
          %857 = vst [vmem:[#allocation13 + $0xa8] sm:$0xff] %v825
          %858 = vst [vmem:[#allocation13 + $0xb0] sm:$0xff] %v826
          %859 = vst [vmem:[#allocation13 + $0xb8] sm:$0xff] %v827
          %860 = vst [vmem:[#allocation13 + $0xc0] sm:$0xff] %v828
          %861 = vst [vmem:[#allocation13 + $0xc8] sm:$0xff] %v829
          %862 = vst [vmem:[#allocation13 + $0xd0] sm:$0xff] %v830
          %863 = vst [vmem:[#allocation13 + $0xd8] sm:$0xff] %v831
          %864 = vst [vmem:[#allocation13 + $0xe0] sm:$0xff] %v832
          %865 = vst [vmem:[#allocation13 + $0xe8] sm:$0xff] %v833
          %866 = vst [vmem:[#allocation13 + $0xf0] sm:$0xff] %v834
          %867 = vst [vmem:[#allocation13 + $0xf8] sm:$0xff] %v835
        $region72: #{tpu_custom_call.1} parent=43 // pred_fallthru
          _
        // Predicated region
        $region73: #{tpu_custom_call.1} parent=43 // pred_check
          %p868 = pneg %p407
        $region74: #{tpu_custom_call.1} parent=43 // pred_check_branch
          %870 = sbr.rel (%p868) target = $region76
        $region75: #{tpu_custom_call.1} parent=43 // pred_region
          %871 = vst [vmem:[#allocation2] sm:$0xff] 0.0
          %872 = vst [vmem:[#allocation2 + $0x8] sm:$0xff] 0.0
          %873 = vst [vmem:[#allocation2 + $0x10] sm:$0xff] 0.0
          %874 = vst [vmem:[#allocation2 + $0x18] sm:$0xff] 0.0
          %875 = vst [vmem:[#allocation2 + $0x20] sm:$0xff] 0.0
          %876 = vst [vmem:[#allocation2 + $0x28] sm:$0xff] 0.0
          %877 = vst [vmem:[#allocation2 + $0x30] sm:$0xff] 0.0
          %878 = vst [vmem:[#allocation2 + $0x38] sm:$0xff] 0.0
          %879 = vst [vmem:[#allocation2 + $0x40] sm:$0xff] 0.0
          %880 = vst [vmem:[#allocation2 + $0x48] sm:$0xff] 0.0
          %881 = vst [vmem:[#allocation2 + $0x50] sm:$0xff] 0.0
          %882 = vst [vmem:[#allocation2 + $0x58] sm:$0xff] 0.0
          %883 = vst [vmem:[#allocation2 + $0x60] sm:$0xff] 0.0
          %884 = vst [vmem:[#allocation2 + $0x68] sm:$0xff] 0.0
          %885 = vst [vmem:[#allocation2 + $0x70] sm:$0xff] 0.0
          %886 = vst [vmem:[#allocation2 + $0x78] sm:$0xff] 0.0
          %887 = vst [vmem:[#allocation2 + $0x80] sm:$0xff] 0.0
          %888 = vst [vmem:[#allocation2 + $0x88] sm:$0xff] 0.0
          %889 = vst [vmem:[#allocation2 + $0x90] sm:$0xff] 0.0
          %890 = vst [vmem:[#allocation2 + $0x98] sm:$0xff] 0.0
          %891 = vst [vmem:[#allocation2 + $0xa0] sm:$0xff] 0.0
          %892 = vst [vmem:[#allocation2 + $0xa8] sm:$0xff] 0.0
          %893 = vst [vmem:[#allocation2 + $0xb0] sm:$0xff] 0.0
          %894 = vst [vmem:[#allocation2 + $0xb8] sm:$0xff] 0.0
          %895 = vst [vmem:[#allocation2 + $0xc0] sm:$0xff] 0.0
          %896 = vst [vmem:[#allocation2 + $0xc8] sm:$0xff] 0.0
          %897 = vst [vmem:[#allocation2 + $0xd0] sm:$0xff] 0.0
          %898 = vst [vmem:[#allocation2 + $0xd8] sm:$0xff] 0.0
          %899 = vst [vmem:[#allocation2 + $0xe0] sm:$0xff] 0.0
          %900 = vst [vmem:[#allocation2 + $0xe8] sm:$0xff] 0.0
          %901 = vst [vmem:[#allocation2 + $0xf0] sm:$0xff] 0.0
          %902 = vst [vmem:[#allocation2 + $0xf8] sm:$0xff] 0.0
        $region76: #{tpu_custom_call.1} parent=43 // pred_fallthru
          _
        %v903 = vld [vmem:[#allocation2] sm:$0xff]
        %v904 = vld [vmem:[#allocation2 + $0x8] sm:$0xff]
        %v905 = vld [vmem:[#allocation2 + $0x10] sm:$0xff]
        %v906 = vld [vmem:[#allocation2 + $0x18] sm:$0xff]
        %v907 = vld [vmem:[#allocation2 + $0x20] sm:$0xff]
        %v908 = vld [vmem:[#allocation2 + $0x28] sm:$0xff]
        %v909 = vld [vmem:[#allocation2 + $0x30] sm:$0xff]
        %v910 = vld [vmem:[#allocation2 + $0x38] sm:$0xff]
        %v911 = vld [vmem:[#allocation2 + $0x40] sm:$0xff]
        %v912 = vld [vmem:[#allocation2 + $0x48] sm:$0xff]
        %v913 = vld [vmem:[#allocation2 + $0x50] sm:$0xff]
        %v914 = vld [vmem:[#allocation2 + $0x58] sm:$0xff]
        %v915 = vld [vmem:[#allocation2 + $0x60] sm:$0xff]
        %v916 = vld [vmem:[#allocation2 + $0x68] sm:$0xff]
        %v917 = vld [vmem:[#allocation2 + $0x70] sm:$0xff]
        %v918 = vld [vmem:[#allocation2 + $0x78] sm:$0xff]
        %v919 = vld [vmem:[#allocation2 + $0x80] sm:$0xff]
        %v920 = vld [vmem:[#allocation2 + $0x88] sm:$0xff]
        %v921 = vld [vmem:[#allocation2 + $0x90] sm:$0xff]
        %v922 = vld [vmem:[#allocation2 + $0x98] sm:$0xff]
        %v923 = vld [vmem:[#allocation2 + $0xa0] sm:$0xff]
        %v924 = vld [vmem:[#allocation2 + $0xa8] sm:$0xff]
        %v925 = vld [vmem:[#allocation2 + $0xb0] sm:$0xff]
        %v926 = vld [vmem:[#allocation2 + $0xb8] sm:$0xff]
        %v927 = vld [vmem:[#allocation2 + $0xc0] sm:$0xff]
        %v928 = vld [vmem:[#allocation2 + $0xc8] sm:$0xff]
        %v929 = vld [vmem:[#allocation2 + $0xd0] sm:$0xff]
        %v930 = vld [vmem:[#allocation2 + $0xd8] sm:$0xff]
        %v931 = vld [vmem:[#allocation2 + $0xe0] sm:$0xff]
        %v932 = vld [vmem:[#allocation2 + $0xe8] sm:$0xff]
        %v933 = vld [vmem:[#allocation2 + $0xf0] sm:$0xff]
        %v934 = vld [vmem:[#allocation2 + $0xf8] sm:$0xff]
        %v935 = vld [vmem:[%s346] sm:$0xff]
        %v936 = vld [vmem:[%s346 + $0x8] sm:$0xff]
        %v937 = vld [vmem:[%s346 + $0x10] sm:$0xff]
        %v938 = vld [vmem:[%s346 + $0x18] sm:$0xff]
        %v939 = vld [vmem:[%s346 + $0x20] sm:$0xff]
        %v940 = vld [vmem:[%s346 + $0x28] sm:$0xff]
        %v941 = vld [vmem:[%s346 + $0x30] sm:$0xff]
        %v942 = vld [vmem:[%s346 + $0x38] sm:$0xff]
        %v943 = vld [vmem:[%s346 + $0x40] sm:$0xff]
        %v944 = vld [vmem:[%s346 + $0x48] sm:$0xff]
        %v945 = vld [vmem:[%s346 + $0x50] sm:$0xff]
        %v946 = vld [vmem:[%s346 + $0x58] sm:$0xff]
        %v947 = vld [vmem:[%s346 + $0x60] sm:$0xff]
        %v948 = vld [vmem:[%s346 + $0x68] sm:$0xff]
        %v949 = vld [vmem:[%s346 + $0x70] sm:$0xff]
        %v950 = vld [vmem:[%s346 + $0x78] sm:$0xff]
        %v951 = vunpack.c.l.s8.bf16 %v935
        %v952 = vunpack.c.l.s8.bf16 %v936
        %v953 = vunpack.c.h.s8.bf16 %v935
        %v954 = vunpack.c.h.s8.bf16 %v936
        %v955 = vunpack.c.l.s8.bf16 %v937
        %v956 = vunpack.c.l.s8.bf16 %v938
        %v957 = vunpack.c.h.s8.bf16 %v937
        %v958 = vunpack.c.h.s8.bf16 %v938
        %v959 = vunpack.c.l.s8.bf16 %v939
        %v960 = vunpack.c.l.s8.bf16 %v940
        %v961 = vunpack.c.h.s8.bf16 %v939
        %v962 = vunpack.c.h.s8.bf16 %v940
        %v963 = vunpack.c.l.s8.bf16 %v941
        %v964 = vunpack.c.l.s8.bf16 %v942
        %v965 = vunpack.c.h.s8.bf16 %v941
        %v966 = vunpack.c.h.s8.bf16 %v942
        %v967 = vunpack.c.l.s8.bf16 %v943
        %v968 = vunpack.c.l.s8.bf16 %v944
        %v969 = vunpack.c.h.s8.bf16 %v943
        %v970 = vunpack.c.h.s8.bf16 %v944
        %v971 = vunpack.c.l.s8.bf16 %v945
        %v972 = vunpack.c.l.s8.bf16 %v946
        %v973 = vunpack.c.h.s8.bf16 %v945
        %v974 = vunpack.c.h.s8.bf16 %v946
        %v975 = vunpack.c.l.s8.bf16 %v947
        %v976 = vunpack.c.l.s8.bf16 %v948
        %v977 = vunpack.c.h.s8.bf16 %v947
        %v978 = vunpack.c.h.s8.bf16 %v948
        %v979 = vunpack.c.l.s8.bf16 %v949
        %v980 = vunpack.c.l.s8.bf16 %v950
        %v981 = vunpack.c.h.s8.bf16 %v949
        %v982 = vunpack.c.h.s8.bf16 %v950
        %v983 = vld [vmem:[#allocation6] sm:$0xf]
        %v984 = vld [vmem:[#allocation6 + $0x4] sm:$0xf]
        %v985 = vld [vmem:[#allocation6 + $0x8] sm:$0xf]
        %v986 = vld [vmem:[#allocation6 + $0xc] sm:$0xf]
        %v987 = vld [vmem:[#allocation6 + $0x10] sm:$0xf]
        %v988 = vld [vmem:[#allocation6 + $0x14] sm:$0xf]
        %v989 = vld [vmem:[#allocation6 + $0x18] sm:$0xf]
        %v990 = vld [vmem:[#allocation6 + $0x1c] sm:$0xf]
        %v991 = vld [vmem:[#allocation6 + $0x20] sm:$0xf]
        %v992 = vld [vmem:[#allocation6 + $0x24] sm:$0xf]
        %v993 = vld [vmem:[#allocation6 + $0x28] sm:$0xf]
        %v994 = vld [vmem:[#allocation6 + $0x2c] sm:$0xf]
        %v995 = vld [vmem:[#allocation6 + $0x30] sm:$0xf]
        %v996 = vld [vmem:[#allocation6 + $0x34] sm:$0xf]
        %v997 = vld [vmem:[#allocation6 + $0x38] sm:$0xf]
        %v998 = vld [vmem:[#allocation6 + $0x3c] sm:$0xf]
        %v999 = vld [vmem:[#allocation6 + $0x40] sm:$0xf]
        %v1000 = vld [vmem:[#allocation6 + $0x44] sm:$0xf]
        %v1001 = vld [vmem:[#allocation6 + $0x48] sm:$0xf]
        %v1002 = vld [vmem:[#allocation6 + $0x4c] sm:$0xf]
        %v1003 = vld [vmem:[#allocation6 + $0x50] sm:$0xf]
        %v1004 = vld [vmem:[#allocation6 + $0x54] sm:$0xf]
        %v1005 = vld [vmem:[#allocation6 + $0x58] sm:$0xf]
        %v1006 = vld [vmem:[#allocation6 + $0x5c] sm:$0xf]
        %v1007 = vld [vmem:[#allocation6 + $0x60] sm:$0xf]
        %v1008 = vld [vmem:[#allocation6 + $0x64] sm:$0xf]
        %v1009 = vld [vmem:[#allocation6 + $0x68] sm:$0xf]
        %v1010 = vld [vmem:[#allocation6 + $0x6c] sm:$0xf]
        %v1011 = vld [vmem:[#allocation6 + $0x70] sm:$0xf]
        %v1012 = vld [vmem:[#allocation6 + $0x74] sm:$0xf]
        %v1013 = vld [vmem:[#allocation6 + $0x78] sm:$0xf]
        %v1014 = vld [vmem:[#allocation6 + $0x7c] sm:$0xf]
        %v1047 = vunpack.c.l.b16 %v983
        %v1048 = vunpack.c.l.b16 %v984
        %v1049 = vunpack.c.l.b16 %v985
        %v1050 = vunpack.c.l.b16 %v986
        %v1051 = vunpack.c.l.b16 %v987
        %v1052 = vunpack.c.l.b16 %v988
        %v1053 = vunpack.c.l.b16 %v989
        %v1054 = vunpack.c.l.b16 %v990
        %v1055 = vunpack.c.l.b16 %v991
        %v1056 = vunpack.c.l.b16 %v992
        %v1057 = vunpack.c.l.b16 %v993
        %v1058 = vunpack.c.l.b16 %v994
        %v1059 = vunpack.c.l.b16 %v995
        %v1060 = vunpack.c.l.b16 %v996
        %v1061 = vunpack.c.l.b16 %v997
        %v1062 = vunpack.c.l.b16 %v998
        %v1063 = vunpack.c.l.b16 %v999
        %v1064 = vunpack.c.l.b16 %v1000
        %v1065 = vunpack.c.l.b16 %v1001
        %v1066 = vunpack.c.l.b16 %v1002
        %v1067 = vunpack.c.l.b16 %v1003
        %v1068 = vunpack.c.l.b16 %v1004
        %v1069 = vunpack.c.l.b16 %v1005
        %v1070 = vunpack.c.l.b16 %v1006
        %v1071 = vunpack.c.l.b16 %v1007
        %v1072 = vunpack.c.l.b16 %v1008
        %v1073 = vunpack.c.l.b16 %v1009
        %v1074 = vunpack.c.l.b16 %v1010
        %v1075 = vunpack.c.l.b16 %v1011
        %v1076 = vunpack.c.l.b16 %v1012
        %v1077 = vunpack.c.l.b16 %v1013
        %v1078 = vunpack.c.l.b16 %v1014
        %v1079 = vpack.c.b16 %v1048, %v1047
        %v1080 = vpack.c.b16 %v1050, %v1049
        %v1081 = vpack.c.b16 %v1052, %v1051
        %v1082 = vpack.c.b16 %v1054, %v1053
        %v1083 = vpack.c.b16 %v1056, %v1055
        %v1084 = vpack.c.b16 %v1058, %v1057
        %v1085 = vpack.c.b16 %v1060, %v1059
        %v1086 = vpack.c.b16 %v1062, %v1061
        %v1087 = vpack.c.b16 %v1064, %v1063
        %v1088 = vpack.c.b16 %v1066, %v1065
        %v1089 = vpack.c.b16 %v1068, %v1067
        %v1090 = vpack.c.b16 %v1070, %v1069
        %v1091 = vpack.c.b16 %v1072, %v1071
        %v1092 = vpack.c.b16 %v1074, %v1073
        %v1093 = vpack.c.b16 %v1076, %v1075
        %v1094 = vpack.c.b16 %v1078, %v1077
        %1111 = vmatprep.subr.bf16.mxu0 0
        %1112 = vmatpush1.bf16.msra.mxu0 %v1079
        %1113 = vmatprep.subr.bf16.mxu0 0
        %1114 = vmatpush1.bf16.msra.mxu0 %v1080
        %1115 = vmatprep.subr.bf16.mxu0 0
        %1116 = vmatpush1.bf16.msra.mxu0 %v1081
        %1117 = vmatprep.subr.bf16.mxu0 0
        %1118 = vmatpush1.bf16.msra.mxu0 %v1082
        %1119 = vmatprep.subr.bf16.mxu0 0
        %1120 = vmatpush1.bf16.msra.mxu0 %v1083
        %1121 = vmatprep.subr.bf16.mxu0 0
        %1122 = vmatpush1.bf16.msra.mxu0 %v1084
        %1123 = vmatprep.subr.bf16.mxu0 0
        %1124 = vmatpush1.bf16.msra.mxu0 %v1085
        %1125 = vmatprep.subr.bf16.mxu0 0
        %1126 = vmatpush1.bf16.msra.mxu0 %v1086
        %1127 = vmatprep.subr.bf16.mxu0 0
        %1128 = vmatpush1.bf16.msra.mxu0 %v1087
        %1129 = vmatprep.subr.bf16.mxu0 0
        %1130 = vmatpush1.bf16.msra.mxu0 %v1088
        %1131 = vmatprep.subr.bf16.mxu0 0
        %1132 = vmatpush1.bf16.msra.mxu0 %v1089
        %1133 = vmatprep.subr.bf16.mxu0 0
        %1134 = vmatpush1.bf16.msra.mxu0 %v1090
        %1135 = vmatprep.subr.bf16.mxu0 0
        %1136 = vmatpush1.bf16.msra.mxu0 %v1091
        %1137 = vmatprep.subr.bf16.mxu0 0
        %1138 = vmatpush1.bf16.msra.mxu0 %v1092
        %1139 = vmatprep.subr.bf16.mxu0 0
        %1140 = vmatpush1.bf16.msra.mxu0 %v1093
        %1141 = vmatprep.subr.bf16.mxu0 0
        %1142 = vmatpush1.bf16.msra.mxu0 %v1094
        %1143 = vmatprep.mubr.bf16.mxu0 %v952
        %1144 = vmatmul.mubr.bf16.gmra.mrb[0].mxu0 %v951
        %v1145 = vpop.f32.mrb[0].mxu0
        %v1146 = vadd.f32 0.0, %v1145
        %v1147 = vpop.f32.mrb[0].mxu0
        %v1148 = vpop.f32.mrb[0].mxu0
        %v1149 = vadd.f32 0.0, %v1148
        %v1150 = vpop.f32.mrb[0].mxu0
        %1151 = vmatprep.mubr.bf16.mxu0 %v954
        %1152 = vmatmul.mubr.bf16.gmra.mrb[0].mxu0 %v953
        %v1153 = vpop.f32.mrb[0].mxu0
        %v1154 = vadd.f32 0.0, %v1153
        %v1155 = vpop.f32.mrb[0].mxu0
        %v1156 = vpop.f32.mrb[0].mxu0
        %v1157 = vadd.f32 0.0, %v1156
        %v1158 = vpop.f32.mrb[0].mxu0
        %1159 = vmatprep.mubr.bf16.mxu0 %v956
        %1160 = vmatmul.mubr.bf16.gmra.mrb[0].mxu0 %v955
        %v1161 = vpop.f32.mrb[0].mxu0
        %v1162 = vadd.f32 0.0, %v1161
        %v1163 = vpop.f32.mrb[0].mxu0
        %v1164 = vpop.f32.mrb[0].mxu0
        %v1165 = vadd.f32 0.0, %v1164
        %v1166 = vpop.f32.mrb[0].mxu0
        %1167 = vmatprep.mubr.bf16.mxu0 %v958
        %1168 = vmatmul.mubr.bf16.gmra.mrb[0].mxu0 %v957
        %v1169 = vpop.f32.mrb[0].mxu0
        %v1170 = vadd.f32 0.0, %v1169
        %v1171 = vpop.f32.mrb[0].mxu0
        %v1172 = vpop.f32.mrb[0].mxu0
        %v1173 = vadd.f32 0.0, %v1172
        %v1174 = vpop.f32.mrb[0].mxu0
        %1175 = vmatprep.mubr.bf16.mxu0 %v960
        %1176 = vmatmul.mubr.bf16.gmra.mrb[0].mxu0 %v959
        %v1177 = vpop.f32.mrb[0].mxu0
        %v1178 = vadd.f32 0.0, %v1177
        %v1179 = vpop.f32.mrb[0].mxu0
        %v1180 = vpop.f32.mrb[0].mxu0
        %v1181 = vadd.f32 0.0, %v1180
        %v1182 = vpop.f32.mrb[0].mxu0
        %1183 = vmatprep.mubr.bf16.mxu0 %v962
        %1184 = vmatmul.mubr.bf16.gmra.mrb[0].mxu0 %v961
        %v1185 = vpop.f32.mrb[0].mxu0
        %v1186 = vadd.f32 0.0, %v1185
        %v1187 = vpop.f32.mrb[0].mxu0
        %v1188 = vpop.f32.mrb[0].mxu0
        %v1189 = vadd.f32 0.0, %v1188
        %v1190 = vpop.f32.mrb[0].mxu0
        %1191 = vmatprep.mubr.bf16.mxu0 %v964
        %1192 = vmatmul.mubr.bf16.gmra.mrb[0].mxu0 %v963
        %v1193 = vpop.f32.mrb[0].mxu0
        %v1194 = vadd.f32 0.0, %v1193
        %v1195 = vpop.f32.mrb[0].mxu0
        %v1196 = vpop.f32.mrb[0].mxu0
        %v1197 = vadd.f32 0.0, %v1196
        %v1198 = vpop.f32.mrb[0].mxu0
        %1199 = vmatprep.mubr.bf16.mxu0 %v966
        %1200 = vmatmul.mubr.bf16.gmra.mrb[0].mxu0 %v965
        %v1201 = vpop.f32.mrb[0].mxu0
        %v1202 = vadd.f32 0.0, %v1201
        %v1203 = vpop.f32.mrb[0].mxu0
        %v1204 = vpop.f32.mrb[0].mxu0
        %v1205 = vadd.f32 0.0, %v1204
        %v1206 = vpop.f32.mrb[0].mxu0
        %1207 = vmatprep.mubr.bf16.mxu0 %v968
        %1208 = vmatmul.mubr.bf16.gmra.mrb[0].mxu0 %v967
        %v1209 = vpop.f32.mrb[0].mxu0
        %v1210 = vadd.f32 0.0, %v1209
        %v1211 = vpop.f32.mrb[0].mxu0
        %v1212 = vpop.f32.mrb[0].mxu0
        %v1213 = vadd.f32 0.0, %v1212
        %v1214 = vpop.f32.mrb[0].mxu0
        %1215 = vmatprep.mubr.bf16.mxu0 %v970
        %1216 = vmatmul.mubr.bf16.gmra.mrb[0].mxu0 %v969
        %v1217 = vpop.f32.mrb[0].mxu0
        %v1218 = vadd.f32 0.0, %v1217
        %v1219 = vpop.f32.mrb[0].mxu0
        %v1220 = vpop.f32.mrb[0].mxu0
        %v1221 = vadd.f32 0.0, %v1220
        %v1222 = vpop.f32.mrb[0].mxu0
        %1223 = vmatprep.mubr.bf16.mxu0 %v972
        %1224 = vmatmul.mubr.bf16.gmra.mrb[0].mxu0 %v971
        %v1225 = vpop.f32.mrb[0].mxu0
        %v1226 = vadd.f32 0.0, %v1225
        %v1227 = vpop.f32.mrb[0].mxu0
        %v1228 = vpop.f32.mrb[0].mxu0
        %v1229 = vadd.f32 0.0, %v1228
        %v1230 = vpop.f32.mrb[0].mxu0
        %1231 = vmatprep.mubr.bf16.mxu0 %v974
        %1232 = vmatmul.mubr.bf16.gmra.mrb[0].mxu0 %v973
        %v1233 = vpop.f32.mrb[0].mxu0
        %v1234 = vadd.f32 0.0, %v1233
        %v1235 = vpop.f32.mrb[0].mxu0
        %v1236 = vpop.f32.mrb[0].mxu0
        %v1237 = vadd.f32 0.0, %v1236
        %v1238 = vpop.f32.mrb[0].mxu0
        %1239 = vmatprep.mubr.bf16.mxu0 %v976
        %1240 = vmatmul.mubr.bf16.gmra.mrb[0].mxu0 %v975
        %v1241 = vpop.f32.mrb[0].mxu0
        %v1242 = vadd.f32 0.0, %v1241
        %v1243 = vpop.f32.mrb[0].mxu0
        %v1244 = vpop.f32.mrb[0].mxu0
        %v1245 = vadd.f32 0.0, %v1244
        %v1246 = vpop.f32.mrb[0].mxu0
        %1247 = vmatprep.mubr.bf16.mxu0 %v978
        %1248 = vmatmul.mubr.bf16.gmra.mrb[0].mxu0 %v977
        %v1249 = vpop.f32.mrb[0].mxu0
        %v1250 = vadd.f32 0.0, %v1249
        %v1251 = vpop.f32.mrb[0].mxu0
        %v1252 = vpop.f32.mrb[0].mxu0
        %v1253 = vadd.f32 0.0, %v1252
        %v1254 = vpop.f32.mrb[0].mxu0
        %1255 = vmatprep.mubr.bf16.mxu0 %v980
        %1256 = vmatmul.mubr.bf16.gmra.mrb[0].mxu0 %v979
        %v1257 = vpop.f32.mrb[0].mxu0
        %v1258 = vadd.f32 0.0, %v1257
        %v1259 = vpop.f32.mrb[0].mxu0
        %v1260 = vpop.f32.mrb[0].mxu0
        %v1261 = vadd.f32 0.0, %v1260
        %v1262 = vpop.f32.mrb[0].mxu0
        %1263 = vmatprep.mubr.bf16.mxu0 %v982
        %1264 = vmatmul.mubr.bf16.gmra.mrb[0].mxu0 %v981
        %v1265 = vpop.f32.mrb[0].mxu0
        %v1266 = vadd.f32 0.0, %v1265
        %v1267 = vpop.f32.mrb[0].mxu0
        %v1268 = vpop.f32.mrb[0].mxu0
        %v1269 = vadd.f32 0.0, %v1268
        %v1270 = vpop.f32.mrb[0].mxu0
        %1271 = vdwg.mxu0
        %v1272 = vadd.f32 %v903, %v1146
        %v1273 = vadd.f32 %v904, %v1149
        %v1274 = vadd.f32 %v905, %v1154
        %v1275 = vadd.f32 %v906, %v1157
        %v1276 = vadd.f32 %v907, %v1162
        %v1277 = vadd.f32 %v908, %v1165
        %v1278 = vadd.f32 %v909, %v1170
        %v1279 = vadd.f32 %v910, %v1173
        %v1280 = vadd.f32 %v911, %v1178
        %v1281 = vadd.f32 %v912, %v1181
        %v1282 = vadd.f32 %v913, %v1186
        %v1283 = vadd.f32 %v914, %v1189
        %v1284 = vadd.f32 %v915, %v1194
        %v1285 = vadd.f32 %v916, %v1197
        %v1286 = vadd.f32 %v917, %v1202
        %v1287 = vadd.f32 %v918, %v1205
        %v1288 = vadd.f32 %v919, %v1210
        %v1289 = vadd.f32 %v920, %v1213
        %v1290 = vadd.f32 %v921, %v1218
        %v1291 = vadd.f32 %v922, %v1221
        %v1292 = vadd.f32 %v923, %v1226
        %v1293 = vadd.f32 %v924, %v1229
        %v1294 = vadd.f32 %v925, %v1234
        %v1295 = vadd.f32 %v926, %v1237
        %v1296 = vadd.f32 %v927, %v1242
        %v1297 = vadd.f32 %v928, %v1245
        %v1298 = vadd.f32 %v929, %v1250
        %v1299 = vadd.f32 %v930, %v1253
        %v1300 = vadd.f32 %v931, %v1258
        %v1301 = vadd.f32 %v932, %v1261
        %v1302 = vadd.f32 %v933, %v1266
        %v1303 = vadd.f32 %v934, %v1269
        %1304 = vst [vmem:[#allocation2] sm:$0xff] %v1272
        %1305 = vst [vmem:[#allocation2 + $0x8] sm:$0xff] %v1273
        %1306 = vst [vmem:[#allocation2 + $0x10] sm:$0xff] %v1274
        %1307 = vst [vmem:[#allocation2 + $0x18] sm:$0xff] %v1275
        %1308 = vst [vmem:[#allocation2 + $0x20] sm:$0xff] %v1276
        %1309 = vst [vmem:[#allocation2 + $0x28] sm:$0xff] %v1277
        %1310 = vst [vmem:[#allocation2 + $0x30] sm:$0xff] %v1278
        %1311 = vst [vmem:[#allocation2 + $0x38] sm:$0xff] %v1279
        %1312 = vst [vmem:[#allocation2 + $0x40] sm:$0xff] %v1280
        %1313 = vst [vmem:[#allocation2 + $0x48] sm:$0xff] %v1281
        %1314 = vst [vmem:[#allocation2 + $0x50] sm:$0xff] %v1282
        %1315 = vst [vmem:[#allocation2 + $0x58] sm:$0xff] %v1283
        %1316 = vst [vmem:[#allocation2 + $0x60] sm:$0xff] %v1284
        %1317 = vst [vmem:[#allocation2 + $0x68] sm:$0xff] %v1285
        %1318 = vst [vmem:[#allocation2 + $0x70] sm:$0xff] %v1286
        %1319 = vst [vmem:[#allocation2 + $0x78] sm:$0xff] %v1287
        %1320 = vst [vmem:[#allocation2 + $0x80] sm:$0xff] %v1288
        %1321 = vst [vmem:[#allocation2 + $0x88] sm:$0xff] %v1289
        %1322 = vst [vmem:[#allocation2 + $0x90] sm:$0xff] %v1290
        %1323 = vst [vmem:[#allocation2 + $0x98] sm:$0xff] %v1291
        %1324 = vst [vmem:[#allocation2 + $0xa0] sm:$0xff] %v1292
        %1325 = vst [vmem:[#allocation2 + $0xa8] sm:$0xff] %v1293
        %1326 = vst [vmem:[#allocation2 + $0xb0] sm:$0xff] %v1294
        %1327 = vst [vmem:[#allocation2 + $0xb8] sm:$0xff] %v1295
        %1328 = vst [vmem:[#allocation2 + $0xc0] sm:$0xff] %v1296
        %1329 = vst [vmem:[#allocation2 + $0xc8] sm:$0xff] %v1297
        %1330 = vst [vmem:[#allocation2 + $0xd0] sm:$0xff] %v1298
        %1331 = vst [vmem:[#allocation2 + $0xd8] sm:$0xff] %v1299
        %1332 = vst [vmem:[#allocation2 + $0xe0] sm:$0xff] %v1300
        %1333 = vst [vmem:[#allocation2 + $0xe8] sm:$0xff] %v1301
        %1334 = vst [vmem:[#allocation2 + $0xf0] sm:$0xff] %v1302
        %1335 = vst [vmem:[#allocation2 + $0xf8] sm:$0xff] %v1303
        // Predicated region
        $region77: #{tpu_custom_call.1} parent=43 // pred_check
          %p1336 = pneg %p407
        $region78: #{tpu_custom_call.1} parent=43 // pred_check_branch
          %1338 = sbr.rel (%p1336) target = $region80
        $region79: #{tpu_custom_call.1} parent=43 // pred_region
          %v1339 = vld [vmem:[#allocation13] sm:$0xff]
          %v1340 = vld [vmem:[#allocation13 + $0x8] sm:$0xff]
          %v1341 = vld [vmem:[#allocation13 + $0x10] sm:$0xff]
          %v1342 = vld [vmem:[#allocation13 + $0x18] sm:$0xff]
          %v1343 = vld [vmem:[#allocation13 + $0x20] sm:$0xff]
          %v1344 = vld [vmem:[#allocation13 + $0x28] sm:$0xff]
          %v1345 = vld [vmem:[#allocation13 + $0x30] sm:$0xff]
          %v1346 = vld [vmem:[#allocation13 + $0x38] sm:$0xff]
          %v1347 = vld [vmem:[#allocation13 + $0x40] sm:$0xff]
          %v1348 = vld [vmem:[#allocation13 + $0x48] sm:$0xff]
          %v1349 = vld [vmem:[#allocation13 + $0x50] sm:$0xff]
          %v1350 = vld [vmem:[#allocation13 + $0x58] sm:$0xff]
          %v1351 = vld [vmem:[#allocation13 + $0x60] sm:$0xff]
          %v1352 = vld [vmem:[#allocation13 + $0x68] sm:$0xff]
          %v1353 = vld [vmem:[#allocation13 + $0x70] sm:$0xff]
          %v1354 = vld [vmem:[#allocation13 + $0x78] sm:$0xff]
          %v1355 = vld [vmem:[#allocation13 + $0x80] sm:$0xff]
          %v1356 = vld [vmem:[#allocation13 + $0x88] sm:$0xff]
          %v1357 = vld [vmem:[#allocation13 + $0x90] sm:$0xff]
          %v1358 = vld [vmem:[#allocation13 + $0x98] sm:$0xff]
          %v1359 = vld [vmem:[#allocation13 + $0xa0] sm:$0xff]
          %v1360 = vld [vmem:[#allocation13 + $0xa8] sm:$0xff]
          %v1361 = vld [vmem:[#allocation13 + $0xb0] sm:$0xff]
          %v1362 = vld [vmem:[#allocation13 + $0xb8] sm:$0xff]
          %v1363 = vld [vmem:[#allocation13 + $0xc0] sm:$0xff]
          %v1364 = vld [vmem:[#allocation13 + $0xc8] sm:$0xff]
          %v1365 = vld [vmem:[#allocation13 + $0xd0] sm:$0xff]
          %v1366 = vld [vmem:[#allocation13 + $0xd8] sm:$0xff]
          %v1367 = vld [vmem:[#allocation13 + $0xe0] sm:$0xff]
          %v1368 = vld [vmem:[#allocation13 + $0xe8] sm:$0xff]
          %v1369 = vld [vmem:[#allocation13 + $0xf0] sm:$0xff]
          %v1370 = vld [vmem:[#allocation13 + $0xf8] sm:$0xff]
          %v1371 = vld [vmem:[#allocation2] sm:$0xff]
          %v1372 = vld [vmem:[#allocation2 + $0x8] sm:$0xff]
          %v1373 = vld [vmem:[#allocation2 + $0x10] sm:$0xff]
          %v1374 = vld [vmem:[#allocation2 + $0x18] sm:$0xff]
          %v1375 = vld [vmem:[#allocation2 + $0x20] sm:$0xff]
          %v1376 = vld [vmem:[#allocation2 + $0x28] sm:$0xff]
          %v1377 = vld [vmem:[#allocation2 + $0x30] sm:$0xff]
          %v1378 = vld [vmem:[#allocation2 + $0x38] sm:$0xff]
          %v1379 = vld [vmem:[#allocation2 + $0x40] sm:$0xff]
          %v1380 = vld [vmem:[#allocation2 + $0x48] sm:$0xff]
          %v1381 = vld [vmem:[#allocation2 + $0x50] sm:$0xff]
          %v1382 = vld [vmem:[#allocation2 + $0x58] sm:$0xff]
          %v1383 = vld [vmem:[#allocation2 + $0x60] sm:$0xff]
          %v1384 = vld [vmem:[#allocation2 + $0x68] sm:$0xff]
          %v1385 = vld [vmem:[#allocation2 + $0x70] sm:$0xff]
          %v1386 = vld [vmem:[#allocation2 + $0x78] sm:$0xff]
          %v1387 = vld [vmem:[#allocation2 + $0x80] sm:$0xff]
          %v1388 = vld [vmem:[#allocation2 + $0x88] sm:$0xff]
          %v1389 = vld [vmem:[#allocation2 + $0x90] sm:$0xff]
          %v1390 = vld [vmem:[#allocation2 + $0x98] sm:$0xff]
          %v1391 = vld [vmem:[#allocation2 + $0xa0] sm:$0xff]
          %v1392 = vld [vmem:[#allocation2 + $0xa8] sm:$0xff]
          %v1393 = vld [vmem:[#allocation2 + $0xb0] sm:$0xff]
          %v1394 = vld [vmem:[#allocation2 + $0xb8] sm:$0xff]
          %v1395 = vld [vmem:[#allocation2 + $0xc0] sm:$0xff]
          %v1396 = vld [vmem:[#allocation2 + $0xc8] sm:$0xff]
          %v1397 = vld [vmem:[#allocation2 + $0xd0] sm:$0xff]
          %v1398 = vld [vmem:[#allocation2 + $0xd8] sm:$0xff]
          %v1399 = vld [vmem:[#allocation2 + $0xe0] sm:$0xff]
          %v1400 = vld [vmem:[#allocation2 + $0xe8] sm:$0xff]
          %v1401 = vld [vmem:[#allocation2 + $0xf0] sm:$0xff]
          %v1402 = vld [vmem:[#allocation2 + $0xf8] sm:$0xff]
          %v1403 = vpack.c.bf16 %v1372, %v1371
          %v1404 = vpack.c.bf16 %v1374, %v1373
          %v1405 = vpack.c.bf16 %v1376, %v1375
          %v1406 = vpack.c.bf16 %v1378, %v1377
          %v1407 = vpack.c.bf16 %v1380, %v1379
          %v1408 = vpack.c.bf16 %v1382, %v1381
          %v1409 = vpack.c.bf16 %v1384, %v1383
          %v1410 = vpack.c.bf16 %v1386, %v1385
          %v1411 = vpack.c.bf16 %v1388, %v1387
          %v1412 = vpack.c.bf16 %v1390, %v1389
          %v1413 = vpack.c.bf16 %v1392, %v1391
          %v1414 = vpack.c.bf16 %v1394, %v1393
          %v1415 = vpack.c.bf16 %v1396, %v1395
          %v1416 = vpack.c.bf16 %v1398, %v1397
          %v1417 = vpack.c.bf16 %v1400, %v1399
          %v1418 = vpack.c.bf16 %v1402, %v1401
          %v1419 = vld [vmem:[%s359] sm:$0xf]
          %v1420 = vld [vmem:[%s359 + $0x4] sm:$0xf]
          %v1421 = vld [vmem:[%s359 + $0x8] sm:$0xf]
          %v1422 = vld [vmem:[%s359 + $0xc] sm:$0xf]
          %v1423 = vld [vmem:[%s359 + $0x10] sm:$0xf]
          %v1424 = vld [vmem:[%s359 + $0x14] sm:$0xf]
          %v1425 = vld [vmem:[%s359 + $0x18] sm:$0xf]
          %v1426 = vld [vmem:[%s359 + $0x1c] sm:$0xf]
          %v1427 = vld [vmem:[%s359 + $0x20] sm:$0xf]
          %v1428 = vld [vmem:[%s359 + $0x24] sm:$0xf]
          %v1429 = vld [vmem:[%s359 + $0x28] sm:$0xf]
          %v1430 = vld [vmem:[%s359 + $0x2c] sm:$0xf]
          %v1431 = vld [vmem:[%s359 + $0x30] sm:$0xf]
          %v1432 = vld [vmem:[%s359 + $0x34] sm:$0xf]
          %v1433 = vld [vmem:[%s359 + $0x38] sm:$0xf]
          %v1434 = vld [vmem:[%s359 + $0x3c] sm:$0xf]
          %v1451 = vunpack.c.l.b16 %v1419
          %v1452 = vunpack.c.l.b16 %v1420
          %v1453 = vunpack.c.l.b16 %v1421
          %v1454 = vunpack.c.l.b16 %v1422
          %v1455 = vunpack.c.l.b16 %v1423
          %v1456 = vunpack.c.l.b16 %v1424
          %v1457 = vunpack.c.l.b16 %v1425
          %v1458 = vunpack.c.l.b16 %v1426
          %v1459 = vunpack.c.l.b16 %v1427
          %v1460 = vunpack.c.l.b16 %v1428
          %v1461 = vunpack.c.l.b16 %v1429
          %v1462 = vunpack.c.l.b16 %v1430
          %v1463 = vunpack.c.l.b16 %v1431
          %v1464 = vunpack.c.l.b16 %v1432
          %v1465 = vunpack.c.l.b16 %v1433
          %v1466 = vunpack.c.l.b16 %v1434
          %v1467 = vpack.c.b16 %v1452, %v1451
          %v1468 = vpack.c.b16 %v1454, %v1453
          %v1469 = vpack.c.b16 %v1456, %v1455
          %v1470 = vpack.c.b16 %v1458, %v1457
          %v1471 = vpack.c.b16 %v1460, %v1459
          %v1472 = vpack.c.b16 %v1462, %v1461
          %v1473 = vpack.c.b16 %v1464, %v1463
          %v1474 = vpack.c.b16 %v1466, %v1465
          %1483 = vmatprep.subr.bf16.mxu0 0
          %1484 = vmatpush1.bf16.msra.mxu0 %v1467
          %1485 = vmatprep.subr.bf16.mxu0 0
          %1486 = vmatpush1.bf16.msra.mxu0 %v1468
          %1487 = vmatprep.subr.bf16.mxu0 0
          %1488 = vmatpush1.bf16.msra.mxu0 %v1469
          %1489 = vmatprep.subr.bf16.mxu0 0
          %1490 = vmatpush1.bf16.msra.mxu0 %v1470
          %1491 = vmatprep.subr.bf16.mxu0 0
          %1492 = vmatpush1.bf16.msra.mxu0 %v1471
          %1493 = vmatprep.subr.bf16.mxu0 0
          %1494 = vmatpush1.bf16.msra.mxu0 %v1472
          %1495 = vmatprep.subr.bf16.mxu0 0
          %1496 = vmatpush1.bf16.msra.mxu0 %v1473
          %1497 = vmatprep.subr.bf16.mxu0 0
          %1498 = vmatpush1.bf16.msra.mxu0 %v1474
          %1499 = vmatprep.subr.bf16.mxu0 0
          %1500 = vmatpush1.bf16.msra.mxu0 0
          %1501 = vmatprep.subr.bf16.mxu0 0
          %1502 = vmatpush1.bf16.msra.mxu0 0
          %1503 = vmatprep.subr.bf16.mxu0 0
          %1504 = vmatpush1.bf16.msra.mxu0 0
          %1505 = vmatprep.subr.bf16.mxu0 0
          %1506 = vmatpush1.bf16.msra.mxu0 0
          %1507 = vmatprep.subr.bf16.mxu0 0
          %1508 = vmatpush1.bf16.msra.mxu0 0
          %1509 = vmatprep.subr.bf16.mxu0 0
          %1510 = vmatpush1.bf16.msra.mxu0 0
          %1511 = vmatprep.subr.bf16.mxu0 0
          %1512 = vmatpush1.bf16.msra.mxu0 0
          %1513 = vmatprep.subr.bf16.mxu0 0
          %1514 = vmatpush1.bf16.msra.mxu0 0
          %1515 = vmatprep.mubr.bf16.mxu0 0
          %1516 = vmatmul.mubr.bf16.gmra.mrb[0].mxu0 %v1403
          %v1517 = vpop.f32.mrb[0].mxu0
          %v1518 = vadd.f32 0.0, %v1517
          %v1519 = vpop.f32.mrb[0].mxu0
          %v1520 = vpop.f32.mrb[0].mxu0
          %v1521 = vadd.f32 0.0, %v1520
          %v1522 = vpop.f32.mrb[0].mxu0
          %1523 = vmatprep.mubr.bf16.mxu0 0
          %1524 = vmatmul.mubr.bf16.gmra.mrb[0].mxu0 %v1404
          %v1525 = vpop.f32.mrb[0].mxu0
          %v1526 = vadd.f32 0.0, %v1525
          %v1527 = vpop.f32.mrb[0].mxu0
          %v1528 = vpop.f32.mrb[0].mxu0
          %v1529 = vadd.f32 0.0, %v1528
          %v1530 = vpop.f32.mrb[0].mxu0
          %1531 = vmatprep.mubr.bf16.mxu0 0
          %1532 = vmatmul.mubr.bf16.gmra.mrb[0].mxu0 %v1405
          %v1533 = vpop.f32.mrb[0].mxu0
          %v1534 = vadd.f32 0.0, %v1533
          %v1535 = vpop.f32.mrb[0].mxu0
          %v1536 = vpop.f32.mrb[0].mxu0
          %v1537 = vadd.f32 0.0, %v1536
          %v1538 = vpop.f32.mrb[0].mxu0
          %1539 = vmatprep.mubr.bf16.mxu0 0
          %1540 = vmatmul.mubr.bf16.gmra.mrb[0].mxu0 %v1406
          %v1541 = vpop.f32.mrb[0].mxu0
          %v1542 = vadd.f32 0.0, %v1541
          %v1543 = vpop.f32.mrb[0].mxu0
          %v1544 = vpop.f32.mrb[0].mxu0
          %v1545 = vadd.f32 0.0, %v1544
          %v1546 = vpop.f32.mrb[0].mxu0
          %1547 = vmatprep.mubr.bf16.mxu0 0
          %1548 = vmatmul.mubr.bf16.gmra.mrb[0].mxu0 %v1407
          %v1549 = vpop.f32.mrb[0].mxu0
          %v1550 = vadd.f32 0.0, %v1549
          %v1551 = vpop.f32.mrb[0].mxu0
          %v1552 = vpop.f32.mrb[0].mxu0
          %v1553 = vadd.f32 0.0, %v1552
          %v1554 = vpop.f32.mrb[0].mxu0
          %1555 = vmatprep.mubr.bf16.mxu0 0
          %1556 = vmatmul.mubr.bf16.gmra.mrb[0].mxu0 %v1408
          %v1557 = vpop.f32.mrb[0].mxu0
          %v1558 = vadd.f32 0.0, %v1557
          %v1559 = vpop.f32.mrb[0].mxu0
          %v1560 = vpop.f32.mrb[0].mxu0
          %v1561 = vadd.f32 0.0, %v1560
          %v1562 = vpop.f32.mrb[0].mxu0
          %1563 = vmatprep.mubr.bf16.mxu0 0
          %1564 = vmatmul.mubr.bf16.gmra.mrb[0].mxu0 %v1409
          %v1565 = vpop.f32.mrb[0].mxu0
          %v1566 = vadd.f32 0.0, %v1565
          %v1567 = vpop.f32.mrb[0].mxu0
          %v1568 = vpop.f32.mrb[0].mxu0
          %v1569 = vadd.f32 0.0, %v1568
          %v1570 = vpop.f32.mrb[0].mxu0
          %1571 = vmatprep.mubr.bf16.mxu0 0
          %1572 = vmatmul.mubr.bf16.gmra.mrb[0].mxu0 %v1410
          %v1573 = vpop.f32.mrb[0].mxu0
          %v1574 = vadd.f32 0.0, %v1573
          %v1575 = vpop.f32.mrb[0].mxu0
          %v1576 = vpop.f32.mrb[0].mxu0
          %v1577 = vadd.f32 0.0, %v1576
          %v1578 = vpop.f32.mrb[0].mxu0
          %1579 = vmatprep.mubr.bf16.mxu0 0
          %1580 = vmatmul.mubr.bf16.gmra.mrb[0].mxu0 %v1411
          %v1581 = vpop.f32.mrb[0].mxu0
          %v1582 = vadd.f32 0.0, %v1581
          %v1583 = vpop.f32.mrb[0].mxu0
          %v1584 = vpop.f32.mrb[0].mxu0
          %v1585 = vadd.f32 0.0, %v1584
          %v1586 = vpop.f32.mrb[0].mxu0
          %1587 = vmatprep.mubr.bf16.mxu0 0
          %1588 = vmatmul.mubr.bf16.gmra.mrb[0].mxu0 %v1412
          %v1589 = vpop.f32.mrb[0].mxu0
          %v1590 = vadd.f32 0.0, %v1589
          %v1591 = vpop.f32.mrb[0].mxu0
          %v1592 = vpop.f32.mrb[0].mxu0
          %v1593 = vadd.f32 0.0, %v1592
          %v1594 = vpop.f32.mrb[0].mxu0
          %1595 = vmatprep.mubr.bf16.mxu0 0
          %1596 = vmatmul.mubr.bf16.gmra.mrb[0].mxu0 %v1413
          %v1597 = vpop.f32.mrb[0].mxu0
          %v1598 = vadd.f32 0.0, %v1597
          %v1599 = vpop.f32.mrb[0].mxu0
          %v1600 = vpop.f32.mrb[0].mxu0
          %v1601 = vadd.f32 0.0, %v1600
          %v1602 = vpop.f32.mrb[0].mxu0
          %1603 = vmatprep.mubr.bf16.mxu0 0
          %1604 = vmatmul.mubr.bf16.gmra.mrb[0].mxu0 %v1414
          %v1605 = vpop.f32.mrb[0].mxu0
          %v1606 = vadd.f32 0.0, %v1605
          %v1607 = vpop.f32.mrb[0].mxu0
          %v1608 = vpop.f32.mrb[0].mxu0
          %v1609 = vadd.f32 0.0, %v1608
          %v1610 = vpop.f32.mrb[0].mxu0
          %1611 = vmatprep.mubr.bf16.mxu0 0
          %1612 = vmatmul.mubr.bf16.gmra.mrb[0].mxu0 %v1415
          %v1613 = vpop.f32.mrb[0].mxu0
          %v1614 = vadd.f32 0.0, %v1613
          %v1615 = vpop.f32.mrb[0].mxu0
          %v1616 = vpop.f32.mrb[0].mxu0
          %v1617 = vadd.f32 0.0, %v1616
          %v1618 = vpop.f32.mrb[0].mxu0
          %1619 = vmatprep.mubr.bf16.mxu0 0
          %1620 = vmatmul.mubr.bf16.gmra.mrb[0].mxu0 %v1416
          %v1621 = vpop.f32.mrb[0].mxu0
          %v1622 = vadd.f32 0.0, %v1621
          %v1623 = vpop.f32.mrb[0].mxu0
          %v1624 = vpop.f32.mrb[0].mxu0
          %v1625 = vadd.f32 0.0, %v1624
          %v1626 = vpop.f32.mrb[0].mxu0
          %1627 = vmatprep.mubr.bf16.mxu0 0
          %1628 = vmatmul.mubr.bf16.gmra.mrb[0].mxu0 %v1417
          %v1629 = vpop.f32.mrb[0].mxu0
          %v1630 = vadd.f32 0.0, %v1629
          %v1631 = vpop.f32.mrb[0].mxu0
          %v1632 = vpop.f32.mrb[0].mxu0
          %v1633 = vadd.f32 0.0, %v1632
          %v1634 = vpop.f32.mrb[0].mxu0
          %1635 = vmatprep.mubr.bf16.mxu0 0
          %1636 = vmatmul.mubr.bf16.gmra.mrb[0].mxu0 %v1418
          %v1637 = vpop.f32.mrb[0].mxu0
          %v1638 = vadd.f32 0.0, %v1637
          %v1639 = vpop.f32.mrb[0].mxu0
          %v1640 = vpop.f32.mrb[0].mxu0
          %v1641 = vadd.f32 0.0, %v1640
          %v1642 = vpop.f32.mrb[0].mxu0
          %1643 = vdwg.mxu0
          %v1644 = vmul.f32 %v1518, 0.70710677
          %v1645 = vmul.f32 %v1521, 0.70710677
          %v1646 = vmul.f32 %v1526, 0.70710677
          %v1647 = vmul.f32 %v1529, 0.70710677
          %v1648 = vmul.f32 %v1534, 0.70710677
          %v1649 = vmul.f32 %v1537, 0.70710677
          %v1650 = vmul.f32 %v1542, 0.70710677
          %v1651 = vmul.f32 %v1545, 0.70710677
          %v1652 = vmul.f32 %v1550, 0.70710677
          %v1653 = vmul.f32 %v1553, 0.70710677
          %v1654 = vmul.f32 %v1558, 0.70710677
          %v1655 = vmul.f32 %v1561, 0.70710677
          %v1656 = vmul.f32 %v1566, 0.70710677
          %v1657 = vmul.f32 %v1569, 0.70710677
          %v1658 = vmul.f32 %v1574, 0.70710677
          %v1659 = vmul.f32 %v1577, 0.70710677
          %v1660 = vmul.f32 %v1582, 0.70710677
          %v1661 = vmul.f32 %v1585, 0.70710677
          %v1662 = vmul.f32 %v1590, 0.70710677
          %v1663 = vmul.f32 %v1593, 0.70710677
          %v1664 = vmul.f32 %v1598, 0.70710677
          %v1665 = vmul.f32 %v1601, 0.70710677
          %v1666 = vmul.f32 %v1606, 0.70710677
          %v1667 = vmul.f32 %v1609, 0.70710677
          %v1668 = vmul.f32 %v1614, 0.70710677
          %v1669 = vmul.f32 %v1617, 0.70710677
          %v1670 = vmul.f32 %v1622, 0.70710677
          %v1671 = vmul.f32 %v1625, 0.70710677
          %v1672 = vmul.f32 %v1630, 0.70710677
          %v1673 = vmul.f32 %v1633, 0.70710677
          %v1674 = vmul.f32 %v1638, 0.70710677
          %v1675 = vmul.f32 %v1641, 0.70710677
          %v1676 = vadd.f32 %v1339, %v1644
          %v1677 = vadd.f32 %v1340, %v1645
          %v1678 = vadd.f32 %v1341, %v1646
          %v1679 = vadd.f32 %v1342, %v1647
          %v1680 = vadd.f32 %v1343, %v1648
          %v1681 = vadd.f32 %v1344, %v1649
          %v1682 = vadd.f32 %v1345, %v1650
          %v1683 = vadd.f32 %v1346, %v1651
          %v1684 = vadd.f32 %v1347, %v1652
          %v1685 = vadd.f32 %v1348, %v1653
          %v1686 = vadd.f32 %v1349, %v1654
          %v1687 = vadd.f32 %v1350, %v1655
          %v1688 = vadd.f32 %v1351, %v1656
          %v1689 = vadd.f32 %v1352, %v1657
          %v1690 = vadd.f32 %v1353, %v1658
          %v1691 = vadd.f32 %v1354, %v1659
          %v1692 = vadd.f32 %v1355, %v1660
          %v1693 = vadd.f32 %v1356, %v1661
          %v1694 = vadd.f32 %v1357, %v1662
          %v1695 = vadd.f32 %v1358, %v1663
          %v1696 = vadd.f32 %v1359, %v1664
          %v1697 = vadd.f32 %v1360, %v1665
          %v1698 = vadd.f32 %v1361, %v1666
          %v1699 = vadd.f32 %v1362, %v1667
          %v1700 = vadd.f32 %v1363, %v1668
          %v1701 = vadd.f32 %v1364, %v1669
          %v1702 = vadd.f32 %v1365, %v1670
          %v1703 = vadd.f32 %v1366, %v1671
          %v1704 = vadd.f32 %v1367, %v1672
          %v1705 = vadd.f32 %v1368, %v1673
          %v1706 = vadd.f32 %v1369, %v1674
          %v1707 = vadd.f32 %v1370, %v1675
          %1708 = vst [vmem:[#allocation13] sm:$0xff] %v1676
          %1709 = vst [vmem:[#allocation13 + $0x8] sm:$0xff] %v1677
          %1710 = vst [vmem:[#allocation13 + $0x10] sm:$0xff] %v1678
          %1711 = vst [vmem:[#allocation13 + $0x18] sm:$0xff] %v1679
          %1712 = vst [vmem:[#allocation13 + $0x20] sm:$0xff] %v1680
          %1713 = vst [vmem:[#allocation13 + $0x28] sm:$0xff] %v1681
          %1714 = vst [vmem:[#allocation13 + $0x30] sm:$0xff] %v1682
          %1715 = vst [vmem:[#allocation13 + $0x38] sm:$0xff] %v1683
          %1716 = vst [vmem:[#allocation13 + $0x40] sm:$0xff] %v1684
          %1717 = vst [vmem:[#allocation13 + $0x48] sm:$0xff] %v1685
          %1718 = vst [vmem:[#allocation13 + $0x50] sm:$0xff] %v1686
          %1719 = vst [vmem:[#allocation13 + $0x58] sm:$0xff] %v1687
          %1720 = vst [vmem:[#allocation13 + $0x60] sm:$0xff] %v1688
          %1721 = vst [vmem:[#allocation13 + $0x68] sm:$0xff] %v1689
          %1722 = vst [vmem:[#allocation13 + $0x70] sm:$0xff] %v1690
          %1723 = vst [vmem:[#allocation13 + $0x78] sm:$0xff] %v1691
          %1724 = vst [vmem:[#allocation13 + $0x80] sm:$0xff] %v1692
          %1725 = vst [vmem:[#allocation13 + $0x88] sm:$0xff] %v1693
          %1726 = vst [vmem:[#allocation13 + $0x90] sm:$0xff] %v1694
          %1727 = vst [vmem:[#allocation13 + $0x98] sm:$0xff] %v1695
          %1728 = vst [vmem:[#allocation13 + $0xa0] sm:$0xff] %v1696
          %1729 = vst [vmem:[#allocation13 + $0xa8] sm:$0xff] %v1697
          %1730 = vst [vmem:[#allocation13 + $0xb0] sm:$0xff] %v1698
          %1731 = vst [vmem:[#allocation13 + $0xb8] sm:$0xff] %v1699
          %1732 = vst [vmem:[#allocation13 + $0xc0] sm:$0xff] %v1700
          %1733 = vst [vmem:[#allocation13 + $0xc8] sm:$0xff] %v1701
          %1734 = vst [vmem:[#allocation13 + $0xd0] sm:$0xff] %v1702
          %1735 = vst [vmem:[#allocation13 + $0xd8] sm:$0xff] %v1703
          %1736 = vst [vmem:[#allocation13 + $0xe0] sm:$0xff] %v1704
          %1737 = vst [vmem:[#allocation13 + $0xe8] sm:$0xff] %v1705
          %1738 = vst [vmem:[#allocation13 + $0xf0] sm:$0xff] %v1706
          %1739 = vst [vmem:[#allocation13 + $0xf8] sm:$0xff] %v1707
        $region80: #{tpu_custom_call.1} parent=43 // pred_fallthru
          _
        // Predicated region
        $region81: #{tpu_custom_call.1} parent=43 // pred_check
          %p1740 = pneg %p210
        $region82: #{tpu_custom_call.1} parent=43 // pred_check_branch
          %1742 = sbr.rel (%p1740) target = $region84
        $region83: #{tpu_custom_call.1} parent=43 // pred_region
          %s1743 = smul.u32 32, %s28
          %s1745 = ssub.s32 4096, 4096
          %1746 = vsyncadd [#allocation5], %s1745
          %s1747 = smul.addr %s1743, 128
          %s1748 = scalar_lea.hbm %s6, %s1747
          %s1749 = sshll.u32 [#allocation13], 4
          %s1750 = int_to_ptr.vmem [resolvable:$true] %s1749
          %1755 = dma.vmem_to_hbm [thread:$0]  %s1750, 4096, %s1748, [#allocation5], 128, 128, 8
        $region84: #{tpu_custom_call.1} parent=43 // pred_fallthru
          _
        // Predicated region
        $region85: #{tpu_custom_call.1} parent=43 // pred_check
          %p1756 = pneg %p210
        $region86: #{tpu_custom_call.1} parent=43 // pred_check_branch
          %1758 = sbr.rel (%p1756) target = $region88
        $region87: #{tpu_custom_call.1} parent=43 // pred_region
          %1759 = dma.done [#allocation5], 4096
        $region88: #{tpu_custom_call.1} parent=43 // pred_fallthru
          _
      $region44: #{tpu_custom_call.1} parent=5 // pred_fallthru
        _
      %p1760 = scmp.le.s32.totalorder 2, %s18
      // Predicated region
      $region89: #{tpu_custom_call.1} parent=5 // pred_check
        %p1761 = pneg %p1760
      $region90: #{tpu_custom_call.1} parent=5 // pred_check_branch
        %1763 = sbr.rel (%p1761) target = $region92
      $region91: #{tpu_custom_call.1} parent=5 // pred_region
        %s1764 = ssub.s32 %s18, 2
      $region92: #{tpu_custom_call.1} parent=5 // pred_fallthru
        _
    $region6: #{tpu_custom_call.1} parent=1 // loop_footer
      %s22 = sadd.s32 1, %s18
    $region7: #{tpu_custom_call.1} parent=1 // loop_footer_branch
      %17 = sbr.rel target = $region3
    $region8: #{tpu_custom_call.1} parent=1 // loop_exit
      _
    %1765 = vsyncpa [#allocation4], 1
    %s1766 = scalar_lea.sflag [#allocation4], 1
    %1767 = vsyncpa %s1766, 1
    %1768 = vsyncpa [#allocation7], 1
    %1769 = vsyncpa [#allocation11], 1
    %1770 = vsyncpa [#allocation5], 1
    %s1771 = scalar_lea.sflag [#allocation5], 1
    %1772 = vsyncpa %s1771, 1

</llo_original>
